<compile_context>
chip_gen: v7x
topology: tpu7x:2x2x1
jax: 0.10.0
libtpu: 0.0.40
codegen_flags: <defaults>
</compile_context>

<pallas_src>
import functools
import math

import jax
import jax.numpy as jnp
from jax.experimental import pallas as pl
from jax.experimental.pallas import tpu as pltpu


_VMEM_LIMIT = 64 * 1024 * 1024   # raise above the 16/32 MiB scoped defaults


# --------------------------------------------------------------------------
# Generic tiled linear (used once, for the patch embedding).
# --------------------------------------------------------------------------

def _linear_kernel(x_ref, w_ref, b_ref, o_ref, acc_ref):
    @pl.when(pl.program_id(2) == 0)
    def _():
        acc_ref[...] = jnp.zeros_like(acc_ref)

    acc_ref[...] += jnp.dot(x_ref[...], w_ref[...],
                            preferred_element_type=jnp.float32)

    @pl.when(pl.program_id(2) == pl.num_programs(2) - 1)
    def _():
        o_ref[...] = (acc_ref[...] + b_ref[...]).astype(o_ref.dtype)


def linear(x, w, b, out_dtype=jnp.float32, tm=256, tn=512, tk=512):
    """y = x @ w + b.  x: (M, K) bf16, w: (K, N) bf16, b: (N,) f32."""
    M, K = x.shape
    N = w.shape[1]
    if M <= tm:
        bm, Mp = M, M
    else:
        bm = tm
        Mp = pl.cdiv(M, tm) * tm
        if Mp != M:
            x = jnp.pad(x, ((0, Mp - M), (0, 0)))
    bn = tn if N % tn == 0 else N
    bk = tk if K % tk == 0 else K
    grid = (Mp // bm, N // bn, K // bk)
    out = pl.pallas_call(
        _linear_kernel,
        out_shape=jax.ShapeDtypeStruct((Mp, N), out_dtype),
        grid=grid,
        in_specs=[
            pl.BlockSpec((bm, bk), lambda i, j, k: (i, k)),
            pl.BlockSpec((bk, bn), lambda i, j, k: (k, j)),
            pl.BlockSpec((1, bn), lambda i, j, k: (0, j)),
        ],
        out_specs=pl.BlockSpec((bm, bn), lambda i, j, k: (i, j)),
        scratch_shapes=[pltpu.VMEM((bm, bn), jnp.float32)],
        compiler_params=pltpu.CompilerParams(
            dimension_semantics=("parallel", "parallel", "arbitrary"),
            vmem_limit_bytes=_VMEM_LIMIT),
    )(x, w, b.reshape(1, N).astype(jnp.float32))
    return out[:M] if Mp != M else out


# --------------------------------------------------------------------------
# Fused attention residual block:
#   LN1( x + out_proj( MHA( x ) ) )   with the head axis as the grid reduction.
# --------------------------------------------------------------------------

def _attn_block_kernel(xb_ref, res_ref, wqkv_ref, bqkv_ref, wout_ref, bout_ref,
                       g_ref, b_ref, of_ref, ob_ref, acc_ref, *, dh, eps):
    h = pl.program_id(1)

    @pl.when(h == 0)
    def _():
        acc_ref[...] = jnp.zeros_like(acc_ref)

    x = xb_ref[0]                                            # (N, D) bf16
    # Per-head fused QKV projection (softmax scale pre-folded into Wq/bq).
    qkv = jnp.dot(x, wqkv_ref[0],
                  preferred_element_type=jnp.float32) + bqkv_ref[0]   # (N, 3Dh) f32
    q = qkv[:, :dh].astype(jnp.bfloat16)
    k = qkv[:, dh:2 * dh].astype(jnp.bfloat16)
    v = qkv[:, 2 * dh:3 * dh].astype(jnp.bfloat16)

    s = jax.lax.dot_general(q, k, (((1,), (1,)), ((), ())),
                            preferred_element_type=jnp.float32)       # (N, N)
    s = s - jnp.max(s, axis=-1, keepdims=True)
    p = jnp.exp(s)
    p = p / jnp.sum(p, axis=-1, keepdims=True)               # exact reciprocal
    o = jnp.dot(p.astype(jnp.bfloat16), v,
                preferred_element_type=jnp.float32)          # (N, Dh)

    # Per-head slice of out_proj, accumulated over the head (grid) axis.
    acc_ref[...] += jnp.dot(o.astype(jnp.bfloat16), wout_ref[0],
                            preferred_element_type=jnp.float32)       # (N, D)

    @pl.when(h == pl.num_programs(1) - 1)
    def _():
        z = acc_ref[...] + bout_ref[...] + res_ref[0].astype(jnp.float32)
        mu = jnp.mean(z, axis=-1, keepdims=True)
        c = z - mu
        var = jnp.mean(c * c, axis=-1, keepdims=True)
        zn = c * jax.lax.rsqrt(var + eps) * g_ref[...] + b_ref[...]
        of_ref[0] = zn                                       # f32 residual stream
        ob_ref[0] = zn.astype(ob_ref.dtype)                  # bf16 for next matmul


def attention_block(xb, res, wqkv, bqkv, wout, bout, gamma, beta, eps=1e-5):
    """xb: (B,N,D) bf16, res: (B,N,D) f32.  Returns (f32, bf16) of shape (B,N,D)."""
    B, N, D = xb.shape
    H, _, threeDh = wqkv.shape
    Dh = threeDh // 3
    kernel = functools.partial(_attn_block_kernel, dh=Dh, eps=eps)
    return pl.pallas_call(
        kernel,
        out_shape=(jax.ShapeDtypeStruct((B, N, D), jnp.float32),
                   jax.ShapeDtypeStruct((B, N, D), jnp.bfloat16)),
        grid=(B, H),
        in_specs=[
            pl.BlockSpec((1, N, D), lambda b, h: (b, 0, 0)),           # x (bf16)
            pl.BlockSpec((1, N, D), lambda b, h: (b, 0, 0)),           # residual (f32)
            pl.BlockSpec((1, D, threeDh), lambda b, h: (h, 0, 0)),     # per-head Wqkv
            pl.BlockSpec((1, 1, threeDh), lambda b, h: (h, 0, 0)),     # per-head bqkv
            pl.BlockSpec((1, Dh, D), lambda b, h: (h, 0, 0)),          # per-head Wout
            pl.BlockSpec((1, D), lambda b, h: (0, 0)),                 # out_proj bias
            pl.BlockSpec((1, D), lambda b, h: (0, 0)),                 # ln gamma
            pl.BlockSpec((1, D), lambda b, h: (0, 0)),                 # ln beta
        ],
        out_specs=[pl.BlockSpec((1, N, D), lambda b, h: (b, 0, 0)),
                   pl.BlockSpec((1, N, D), lambda b, h: (b, 0, 0))],
        scratch_shapes=[pltpu.VMEM((N, D), jnp.float32)],
        compiler_params=pltpu.CompilerParams(
            dimension_semantics=("parallel", "arbitrary"),
            vmem_limit_bytes=_VMEM_LIMIT),
    )(xb, res, wqkv, bqkv, wout,
      bout.reshape(1, D), gamma.reshape(1, D), beta.reshape(1, D))


# --------------------------------------------------------------------------
# Fused FFN residual block: LN2( x + lin2( relu( lin1(x) ) ) )
# The (bm, 4D) intermediate lives only in VMEM.
# --------------------------------------------------------------------------

def _ffn_kernel(xb_ref, res_ref, w1_ref, b1_ref, w2_ref, b2_ref, g_ref, bb_ref,
                of_ref, ob_ref, acc_ref, *, eps):
    k = pl.program_id(1)

    @pl.when(k == 0)
    def _():
        acc_ref[...] = jnp.zeros_like(acc_ref)

    acc_ref[...] += jnp.dot(xb_ref[...], w1_ref[...],
                            preferred_element_type=jnp.float32)       # (bm, 4D)

    @pl.when(k == pl.num_programs(1) - 1)
    def _():
        h1 = jnp.maximum(acc_ref[...] + b1_ref[...], 0.0).astype(jnp.bfloat16)
        z = jnp.dot(h1, w2_ref[...], preferred_element_type=jnp.float32)
        z = z + b2_ref[...] + res_ref[...].astype(jnp.float32)
        mu = jnp.mean(z, axis=-1, keepdims=True)
        c = z - mu
        var = jnp.mean(c * c, axis=-1, keepdims=True)
        zn = c * jax.lax.rsqrt(var + eps) * g_ref[...] + bb_ref[...]
        of_ref[...] = zn
        ob_ref[...] = zn.astype(ob_ref.dtype)


def ffn_block(xb, res, w1, b1, w2, b2, gamma, beta, eps=1e-5, tm=256, tk=512):
    """xb: (M,D) bf16, res: (M,D) f32, w1: (D,4D) bf16, w2: (4D,D) bf16."""
    M, D = xb.shape
    F = w1.shape[1]
    if M <= tm:
        bm, Mp = M, M
    else:
        bm = tm
        Mp = pl.cdiv(M, tm) * tm
        if Mp != M:
            xb = jnp.pad(xb, ((0, Mp - M), (0, 0)))
            res = jnp.pad(res, ((0, Mp - M), (0, 0)))
    bk = tk if D % tk == 0 else D
    grid = (Mp // bm, D // bk)
    of, ob = pl.pallas_call(
        functools.partial(_ffn_kernel, eps=eps),
        out_shape=(jax.ShapeDtypeStruct((Mp, D), jnp.float32),
                   jax.ShapeDtypeStruct((Mp, D), jnp.bfloat16)),
        grid=grid,
        in_specs=[
            pl.BlockSpec((bm, bk), lambda i, k: (i, k)),     # x (bf16)
            pl.BlockSpec((bm, D), lambda i, k: (i, 0)),      # residual (f32)
            pl.BlockSpec((bk, F), lambda i, k: (k, 0)),      # W1
            pl.BlockSpec((1, F), lambda i, k: (0, 0)),       # b1
            pl.BlockSpec((F, D), lambda i, k: (0, 0)),       # W2 (loaded once)
            pl.BlockSpec((1, D), lambda i, k: (0, 0)),       # b2
            pl.BlockSpec((1, D), lambda i, k: (0, 0)),       # ln gamma
            pl.BlockSpec((1, D), lambda i, k: (0, 0)),       # ln beta
        ],
        out_specs=[pl.BlockSpec((bm, D), lambda i, k: (i, 0)),
                   pl.BlockSpec((bm, D), lambda i, k: (i, 0))],
        scratch_shapes=[pltpu.VMEM((bm, F), jnp.float32)],
        compiler_params=pltpu.CompilerParams(
            dimension_semantics=("parallel", "arbitrary"),
            vmem_limit_bytes=_VMEM_LIMIT),
    )(xb, res, w1, b1.reshape(1, F), w2, b2.reshape(1, D),
      gamma.reshape(1, D), beta.reshape(1, D))
    if Mp != M:
        of, ob = of[:M], ob[:M]
    return of, ob


# ------------------------------ glue helpers -------------------------------

def extract_patches(img, patch_size, stride):
    """img: (B, F, T) single channel -> (B, P, ph*pw) patches, (fi, ti) order."""
    B, Fdim, Tdim = img.shape
    ph, pw = patch_size
    sf, st = stride
    nf = (Fdim - ph) // sf + 1
    nt = (Tdim - pw) // st + 1
    if (sf, st) == (ph, pw):
        # Non-overlapping: a single reshape/transpose.
        p = img[:, :nf * ph, :nt * pw]
        p = p.reshape(B, nf, ph, nt, pw).transpose(0, 1, 3, 2, 4)
        return p.reshape(B, nf * nt, ph * pw), nf * nt
    # Overlapping strides (real AST uses fstride=tstride=10): conv im2col.
    p = jax.lax.conv_general_dilated_patches(
        img[:, None, :, :], filter_shape=(ph, pw), window_strides=(sf, st),
        padding="VALID", dimension_numbers=("NCHW", "OIHW", "NCHW"))
    p = p.reshape(B, ph * pw, nf * nt).transpose(0, 2, 1)
    return p, nf * nt


def init_params(key, *, embed_dim, depth, num_heads, label_dim, patch_size, num_patches):
    """Deterministic synthetic parameters matching the PyTorch module's shapes."""
    del num_heads
    D = embed_dim
    ph, pw = patch_size
    keys = jax.random.split(key, 8 + depth)

    def nrm(k, shape, std=0.02):
        return jax.random.normal(k, shape, jnp.float32) * std

    params = {
        "proj_w": nrm(keys[0], (D, 1, ph, pw)),               # Conv2d (out, in, kh, kw)
        "proj_b": nrm(keys[1], (D,)),
        "cls_token": jnp.zeros((1, 1, D), jnp.float32),
        "pos_embed": nrm(keys[2], (1, num_patches + 1, D)),
        "norm_g": jnp.ones((D,), jnp.float32),
        "norm_b": jnp.zeros((D,), jnp.float32),
        "head_w": nrm(keys[3], (label_dim, D)),
        "head_b": nrm(keys[4], (label_dim,)),
        "layers": [],
    }
    for l in range(depth):
        lk = jax.random.split(keys[8 + l], 8)
        params["layers"].append({
            "in_proj_w": nrm(lk[0], (3 * D, D)),
            "in_proj_b": nrm(lk[1], (3 * D,)),
            "out_proj_w": nrm(lk[2], (D, D)),
            "out_proj_b": nrm(lk[3], (D,)),
            "lin1_w": nrm(lk[4], (4 * D, D)),
            "lin1_b": nrm(lk[5], (4 * D,)),
            "lin2_w": nrm(lk[6], (D, 4 * D)),
            "lin2_b": nrm(lk[7], (D,)),
            "ln1_g": jnp.ones((D,), jnp.float32),
            "ln1_b": jnp.zeros((D,), jnp.float32),
            "ln2_g": jnp.ones((D,), jnp.float32),
            "ln2_b": jnp.zeros((D,), jnp.float32),
        })
    return params


def prepare_params(params, num_heads):
    """One-time weight prep: transpose, cast to bf16, per-head layout, fold softmax scale."""
    D = params["proj_b"].shape[0]
    H = num_heads
    Dh = D // H
    scale = 1.0 / math.sqrt(Dh)
    bf16 = jnp.bfloat16

    def head_cols(w):                      # torch (D_out, D_in) -> (H, D_in, Dh) of w.T
        return w.T.reshape(D, H, Dh).transpose(1, 0, 2)

    pp = {
        "proj_w_t": params["proj_w"].reshape(D, -1).T.astype(bf16),   # (ph*pw, D)
        "proj_b": params["proj_b"],
        "cls_token": params["cls_token"],
        "pos_embed": params["pos_embed"],
        "norm_g": params["norm_g"],
        "norm_b": params["norm_b"],
        "head_w": params["head_w"],
        "head_b": params["head_b"],
        "layers": [],
    }
    for lp in params["layers"]:
        wq, wk, wv = jnp.split(lp["in_proj_w"], 3, axis=0)
        bq, bk_, bv = jnp.split(lp["in_proj_b"], 3)
        wq, bq = wq * scale, bq * scale                      # fold softmax scale into Q
        wqkv = jnp.concatenate(
            [head_cols(wq), head_cols(wk), head_cols(wv)], axis=-1).astype(bf16)   # (H, D, 3Dh)
        bqkv = jnp.concatenate(
            [bq.reshape(H, 1, Dh), bk_.reshape(H, 1, Dh), bv.reshape(H, 1, Dh)],
            axis=-1).astype(jnp.float32)                                           # (H, 1, 3Dh)
        wout = lp["out_proj_w"].T.reshape(H, Dh, D).astype(bf16)                    # (H, Dh, D)
        pp["layers"].append({
            "wqkv": wqkv, "bqkv": bqkv, "wout": wout, "bout": lp["out_proj_b"],
            "ln1_g": lp["ln1_g"], "ln1_b": lp["ln1_b"],
            "w1": lp["lin1_w"].T.astype(bf16), "b1": lp["lin1_b"],
            "w2": lp["lin2_w"].T.astype(bf16), "b2": lp["lin2_b"],
            "ln2_g": lp["ln2_g"], "ln2_b": lp["ln2_b"],
        })
    return pp


# ------------------------------ model forward ------------------------------

def ast_forward(x, pp, *, patch_size, stride):
    """x: (B, input_tdim, input_fdim) -> logits (B, label_dim)."""
    B = x.shape[0]
    bf16 = jnp.bfloat16
    img = jnp.transpose(x, (0, 2, 1))                        # unsqueeze(1).transpose(2,3), C=1
    patches, P = extract_patches(img, patch_size, stride)    # (B, P, ph*pw)
    D = pp["proj_b"].shape[0]

    # Patch embedding (conv with kernel==stride==patch -> im2col matmul on MXU).
    tok = linear(patches.reshape(B * P, -1).astype(bf16),
                 pp["proj_w_t"], pp["proj_b"]).reshape(B, P, D)

    cls = jnp.broadcast_to(pp["cls_token"], (B, 1, D))
    h = jnp.concatenate([cls, tok], axis=1)                  # (B, N, D) f32
    N = P + 1
    h = h + pp["pos_embed"][:, :N, :]                        # pos_drop is identity (eval)
    hb = h.astype(bf16)                                      # the only host-side cast

    for lp in pp["layers"]:
        # Fused: LN1(x + out_proj(MHA(x)))
        h, hb = attention_block(hb, h, lp["wqkv"], lp["bqkv"], lp["wout"],
                                lp["bout"], lp["ln1_g"], lp["ln1_b"])
        # Fused: LN2(x + lin2(relu(lin1(x))))
        h2d, hb2d = ffn_block(hb.reshape(B * N, D), h.reshape(B * N, D),
                              lp["w1"], lp["b1"], lp["w2"], lp["b2"],
                              lp["ln2_g"], lp["ln2_b"])
        h, hb = h2d.reshape(B, N, D), hb2d.reshape(B, N, D)

    # Final LN is per-row and only the CLS row feeds the head -> tiny, left to XLA.
    cls_out = h[:, 0, :]
    mu = jnp.mean(cls_out, axis=-1, keepdims=True)
    var = jnp.mean((cls_out - mu) ** 2, axis=-1, keepdims=True)
    cls_n = (cls_out - mu) * jax.lax.rsqrt(var + 1e-5) * pp["norm_g"] + pp["norm_b"]
    return cls_n @ pp["head_w"].T + pp["head_b"]


# --------------------------- pure-JAX reference -----------------------------

def ref_forward(x, params, *, num_heads, patch_size, stride):
    B = x.shape[0]
    img = jnp.transpose(x, (0, 2, 1))
    patches, P = extract_patches(img, patch_size, stride)
    D = params["proj_b"].shape[0]
    tok = patches @ params["proj_w"].reshape(D, -1).T + params["proj_b"]
    cls = jnp.broadcast_to(params["cls_token"], (B, 1, D))
    h = jnp.concatenate([cls, tok], axis=1)
    N = P + 1
    h = h + params["pos_embed"][:, :N, :]
    H = num_heads
    Dh = D // H

    def ln(z, g, b, eps=1e-5):
        mu = jnp.mean(z, -1, keepdims=True)
        var = jnp.mean((z - mu) ** 2, -1, keepdims=True)
        return (z - mu) * jax.lax.rsqrt(var + eps) * g + b

    for lp in params["layers"]:
        qkv = h @ lp["in_proj_w"].T + lp["in_proj_b"]
        q, k, v = jnp.split(qkv, 3, axis=-1)
        q = q.reshape(B, N, H, Dh).transpose(0, 2, 1, 3)
        k = k.reshape(B, N, H, Dh).transpose(0, 2, 1, 3)
        v = v.reshape(B, N, H, Dh).transpose(0, 2, 1, 3)
        s = jnp.einsum("bhnd,bhmd->bhnm", q, k) / math.sqrt(Dh)
        p = jax.nn.softmax(s, axis=-1)
        ao = jnp.einsum("bhnm,bhmd->bhnd", p, v).transpose(0, 2, 1, 3).reshape(B, N, D)
        ao = ao @ lp["out_proj_w"].T + lp["out_proj_b"]
        h = ln(h + ao, lp["ln1_g"], lp["ln1_b"])
        ff = jax.nn.relu(h @ lp["lin1_w"].T + lp["lin1_b"]) @ lp["lin2_w"].T + lp["lin2_b"]
        h = ln(h + ff, lp["ln2_g"], lp["ln2_b"])
    h = ln(h, params["norm_g"], params["norm_b"])
    return h[:, 0] @ params["head_w"].T + params["head_b"]


# ---------------------------------- main ------------------------------------

if __name__ == "__main__":
    # Small config consistent with the module structure (scaled-down ASTModel).
    B = 2
    input_fdim, input_tdim = 32, 32
    embed_dim, depth, num_heads, label_dim = 128, 2, 4, 23
    patch_size = (16, 16)
    stride = (16, 16)          # (fstride, tstride)
    nf = (input_fdim - patch_size[0]) // stride[0] + 1
    nt = (input_tdim - patch_size[1]) // stride[1] + 1
    num_patches = nf * nt      # 4 patches -> sequence length 5 with CLS token

    key = jax.random.PRNGKey(0)
    pkey, xkey = jax.random.split(key)
    params = init_params(pkey, embed_dim=embed_dim, depth=depth, num_heads=num_heads,
                         label_dim=label_dim, patch_size=patch_size,
                         num_patches=num_patches)
    prepped = prepare_params(params, num_heads)              # one-time weight prep
    x = jax.random.normal(xkey, (B, input_tdim, input_fdim), jnp.float32)

    fwd = jax.jit(functools.partial(ast_forward, patch_size=patch_size, stride=stride))
    out = jax.block_until_ready(fwd(x, prepped))

    ref = ref_forward(x, params, num_heads=num_heads, patch_size=patch_size, stride=stride)
    assert out.shape == (B, label_dim), out.shape
    assert bool(jnp.all(jnp.isfinite(out)))
    assert bool(jnp.allclose(out, ref, atol=5e-2, rtol=5e-2)), "Pallas vs JAX reference mismatch"

    print("KERNEL_OK")
</pallas_src>

<mosaic_0001>
module attributes {stable_mosaic.version = 11 : i64} {
  func.func @_linear_kernel(%arg0: i32, %arg1: i32, %arg2: i32, %arg3: memref<8x256xbf16, #tpu.memory_space<vmem>>, %arg4: memref<256x128xbf16, #tpu.memory_space<vmem>>, %arg5: memref<1x128xf32, #tpu.memory_space<vmem>>, %arg6: memref<8x128xf32, #tpu.memory_space<vmem>>, %arg7: memref<8x128xf32, #tpu.memory_space<vmem>>) attributes {dimension_semantics = [#tpu.dimension_semantics<parallel>, #tpu.dimension_semantics<parallel>, #tpu.dimension_semantics<arbitrary>], iteration_bounds = array<i64: 1, 1, 1>, scalar_prefetch = 0 : i64, scratch_operands = 1 : i64, tpu.core_type = #tpu.core_type<tc>, window_params = [{transform_indices = @transform_0, window_bounds = array<i64: 8, 256>}, {transform_indices = @transform_1, window_bounds = array<i64: 256, 128>}, {transform_indices = @transform_2, window_bounds = array<i64: 1, 128>}, {transform_indices = @transform_3, window_bounds = array<i64: 8, 128>}]} {
    %c0_i32 = arith.constant 0 : i32
    %0 = arith.cmpi eq, %arg2, %c0_i32 : i32
    %1 = arith.extui %0 : i1 to i32
    %c0_i32_0 = arith.constant 0 : i32
    %2 = arith.cmpi ne, %1, %c0_i32_0 : i32
    scf.if %2 {
      %cst_10 = arith.constant 0.000000e+00 : f32
      %12 = vector.broadcast %cst_10 : f32 to vector<8x128xf32>
      %c0_11 = arith.constant 0 : index
      %c0_12 = arith.constant 0 : index
      %13 = vector.load %arg7[%c0_11, %c0_12] : memref<8x128xf32, #tpu.memory_space<vmem>>, vector<8x128xf32>
      tpu.vector_store %arg7[%c0_11, %c0_12], %12 {strides = array<i32>} : memref<8x128xf32, #tpu.memory_space<vmem>>, vector<8x128xf32>,
    } else {
    }
    %c0 = arith.constant 0 : index
    %c0_1 = arith.constant 0 : index
    %3 = vector.load %arg7[%c0, %c0_1] : memref<8x128xf32, #tpu.memory_space<vmem>>, vector<8x128xf32>
    %c0_2 = arith.constant 0 : index
    %c0_3 = arith.constant 0 : index
    %4 = vector.load %arg3[%c0_2, %c0_3] : memref<8x256xbf16, #tpu.memory_space<vmem>>, vector<8x256xbf16>
    %c0_4 = arith.constant 0 : index
    %c0_5 = arith.constant 0 : index
    %5 = vector.load %arg4[%c0_4, %c0_5] : memref<256x128xbf16, #tpu.memory_space<vmem>>, vector<256x128xbf16>
    %cst = arith.constant dense<0.000000e+00> : vector<8x128xf32>
    %6 = tpu.matmul %4, %5, %cst {dimension_numbers = #tpu.dot_dimension_numbers<[1], [0], [0], [1], [0, 0, 1, 1], [], []>} : vector<8x256xbf16>, vector<256x128xbf16>, vector<8x128xf32> -> vector<8x128xf32>
    %7 = arith.addf %3, %6 : vector<8x128xf32>
    %c0_6 = arith.constant 0 : index
    %c0_7 = arith.constant 0 : index
    %8 = vector.load %arg7[%c0_6, %c0_7] : memref<8x128xf32, #tpu.memory_space<vmem>>, vector<8x128xf32>
    tpu.vector_store %arg7[%c0_6, %c0_7], %7 {strides = array<i32>} : memref<8x128xf32, #tpu.memory_space<vmem>>, vector<8x128xf32>,
    %c0_i32_8 = arith.constant 0 : i32
    %9 = arith.cmpi eq, %arg2, %c0_i32_8 : i32
    %10 = arith.extui %9 : i1 to i32
    %c0_i32_9 = arith.constant 0 : i32
    %11 = arith.cmpi ne, %10, %c0_i32_9 : i32
    scf.if %11 {
      %c0_10 = arith.constant 0 : index
      %c0_11 = arith.constant 0 : index
      %12 = vector.load %arg7[%c0_10, %c0_11] : memref<8x128xf32, #tpu.memory_space<vmem>>, vector<8x128xf32>
      %c0_12 = arith.constant 0 : index
      %c0_13 = arith.constant 0 : index
      %13 = vector.load %arg5[%c0_12, %c0_13] : memref<1x128xf32, #tpu.memory_space<vmem>>, vector<1x128xf32>
      %14 = vector.broadcast %13 : vector<1x128xf32> to vector<8x128xf32>
      %15 = arith.addf %12, %14 : vector<8x128xf32>
      %c0_14 = arith.constant 0 : index
      %c0_15 = arith.constant 0 : index
      %16 = vector.load %arg6[%c0_14, %c0_15] : memref<8x128xf32, #tpu.memory_space<vmem>>, vector<8x128xf32>
      tpu.vector_store %arg6[%c0_14, %c0_15], %15 {strides = array<i32>} : memref<8x128xf32, #tpu.memory_space<vmem>>, vector<8x128xf32>,
    } else {
    }
    return
  }
  func.func @transform_0(%arg0: i32, %arg1: i32, %arg2: i32) -> (i32, i32) {
    %c0_i32 = arith.constant 0 : i32
    return %arg0, %arg2 : i32, i32
  }
  func.func @transform_1(%arg0: i32, %arg1: i32, %arg2: i32) -> (i32, i32) {
    %c0_i32 = arith.constant 0 : i32
    return %arg2, %arg1 : i32, i32
  }
  func.func @transform_2(%arg0: i32, %arg1: i32, %arg2: i32) -> (i32, i32) {
    %c0_i32 = arith.constant 0 : i32
    %c0_i32_0 = arith.constant 0 : i32
    return %c0_i32, %arg1 : i32, i32
  }
  func.func @transform_3(%arg0: i32, %arg1: i32, %arg2: i32) -> (i32, i32) {
    %c0_i32 = arith.constant 0 : i32
    return %arg0, %arg1 : i32, i32
  }
}

module attributes {stable_mosaic.version = 11 : i64} {
  func.func @_attn_block_kernel(%arg0: i32, %arg1: i32, %arg2: memref<1x5x128xbf16, #tpu.memory_space<vmem>>, %arg3: memref<1x5x128xf32, #tpu.memory_space<vmem>>, %arg4: memref<1x128x96xbf16, #tpu.memory_space<vmem>>, %arg5: memref<1x1x96xf32, #tpu.memory_space<vmem>>, %arg6: memref<1x32x128xbf16, #tpu.memory_space<vmem>>, %arg7: memref<1x128xf32, #tpu.memory_space<vmem>>, %arg8: memref<1x128xf32, #tpu.memory_space<vmem>>, %arg9: memref<1x128xf32, #tpu.memory_space<vmem>>, %arg10: memref<1x5x128xf32, #tpu.memory_space<vmem>>, %arg11: memref<1x5x128xbf16, #tpu.memory_space<vmem>>, %arg12: memref<5x128xf32, #tpu.memory_space<vmem>>) attributes {dimension_semantics = [#tpu.dimension_semantics<parallel>, #tpu.dimension_semantics<arbitrary>], iteration_bounds = array<i64: 2, 4>, scalar_prefetch = 0 : i64, scratch_operands = 1 : i64, tpu.core_type = #tpu.core_type<tc>, window_params = [{transform_indices = @transform_0, window_bounds = array<i64: 1, 5, 128>}, {transform_indices = @transform_1, window_bounds = array<i64: 1, 5, 128>}, {transform_indices = @transform_2, window_bounds = array<i64: 1, 128, 96>}, {transform_indices = @transform_3, window_bounds = array<i64: 1, 1, 96>}, {transform_indices = @transform_4, window_bounds = array<i64: 1, 32, 128>}, {pipeline_mode = #tpu.pipeline_mode<synchronous>, transform_indices = @transform_5, window_bounds = array<i64: 1, 128>}, {pipeline_mode = #tpu.pipeline_mode<synchronous>, transform_indices = @transform_6, window_bounds = array<i64: 1, 128>}, {pipeline_mode = #tpu.pipeline_mode<synchronous>, transform_indices = @transform_7, window_bounds = array<i64: 1, 128>}, {transform_indices = @transform_8, window_bounds = array<i64: 1, 5, 128>}, {transform_indices = @transform_9, window_bounds = array<i64: 1, 5, 128>}]} {
    %c0_i32 = arith.constant 0 : i32
    %0 = arith.cmpi eq, %arg1, %c0_i32 : i32
    %1 = arith.extui %0 : i1 to i32
    %c0_i32_0 = arith.constant 0 : i32
    %2 = arith.cmpi ne, %1, %c0_i32_0 : i32
    scf.if %2 {
      %cst_22 = arith.constant 0.000000e+00 : f32
      %40 = vector.broadcast %cst_22 : f32 to vector<5x128xf32>
      %c0_23 = arith.constant 0 : index
      %c0_24 = arith.constant 0 : index
      %41 = vector.load %arg12[%c0_23, %c0_24] : memref<5x128xf32, #tpu.memory_space<vmem>>, vector<5x128xf32>
      tpu.vector_store %arg12[%c0_23, %c0_24], %40 {strides = array<i32>} : memref<5x128xf32, #tpu.memory_space<vmem>>, vector<5x128xf32>,
    } else {
    }
    %c0 = arith.constant 0 : index
    %c0_1 = arith.constant 0 : index
    %c0_2 = arith.constant 0 : index
    %3 = vector.load %arg2[%c0, %c0_1, %c0_2] : memref<1x5x128xbf16, #tpu.memory_space<vmem>>, vector<1x5x128xbf16>
    %4 = vector.shape_cast %3 : vector<1x5x128xbf16> to vector<5x128xbf16>
    %c0_3 = arith.constant 0 : index
    %c0_4 = arith.constant 0 : index
    %c0_5 = arith.constant 0 : index
    %5 = vector.load %arg4[%c0_3, %c0_4, %c0_5] : memref<1x128x96xbf16, #tpu.memory_space<vmem>>, vector<1x128x96xbf16>
    %6 = vector.shape_cast %5 : vector<1x128x96xbf16> to vector<128x96xbf16>
    %cst = arith.constant dense<0.000000e+00> : vector<5x96xf32>
    %7 = tpu.matmul %4, %6, %cst {dimension_numbers = #tpu.dot_dimension_numbers<[1], [0], [0], [1], [0, 0, 1, 1], [], []>} : vector<5x128xbf16>, vector<128x96xbf16>, vector<5x96xf32> -> vector<5x96xf32>
    %c0_6 = arith.constant 0 : index
    %c0_7 = arith.constant 0 : index
    %c0_8 = arith.constant 0 : index
    %8 = vector.load %arg5[%c0_6, %c0_7, %c0_8] : memref<1x1x96xf32, #tpu.memory_space<vmem>>, vector<1x1x96xf32>
    %9 = vector.shape_cast %8 : vector<1x1x96xf32> to vector<1x96xf32>
    %10 = vector.broadcast %9 : vector<1x96xf32> to vector<5x96xf32>
    %11 = arith.addf %7, %10 : vector<5x96xf32>
    %12 = vector.extract_strided_slice %11 {offsets = [0, 0], sizes = [5, 32], strides = [1, 1]} : vector<5x96xf32> to vector<5x32xf32>
    %13 = arith.truncf %12 : vector<5x32xf32> to vector<5x32xbf16>
    %14 = vector.extract_strided_slice %11 {offsets = [0, 32], sizes = [5, 32], strides = [1, 1]} : vector<5x96xf32> to vector<5x32xf32>
    %15 = arith.truncf %14 : vector<5x32xf32> to vector<5x32xbf16>
    %16 = vector.extract_strided_slice %11 {offsets = [0, 64], sizes = [5, 32], strides = [1, 1]} : vector<5x96xf32> to vector<5x32xf32>
    %17 = arith.truncf %16 : vector<5x32xf32> to vector<5x32xbf16>
    %cst_9 = arith.constant dense<0.000000e+00> : vector<5x5xf32>
    %18 = tpu.matmul %13, %15, %cst_9 {dimension_numbers = #tpu.dot_dimension_numbers<[1], [1], [0], [0], [0, 0, 1, 0], [], []>} : vector<5x32xbf16>, vector<5x32xbf16>, vector<5x5xf32> -> vector<5x5xf32>
    %cst_10 = arith.constant dense<0xFF800000> : vector<5xf32>
    %19 = vector.multi_reduction <maximumf>, %18, %cst_10 [1] : vector<5x5xf32> to vector<5xf32>
    %20 = vector.shape_cast %19 : vector<5xf32> to vector<5x1xf32>
    %21 = vector.broadcast %20 : vector<5x1xf32> to vector<5x5xf32>
    %22 = arith.subf %18, %21 : vector<5x5xf32>
    %23 = math.exp %22 : vector<5x5xf32>
    %cst_11 = arith.constant dense<0.000000e+00> : vector<5xf32>
    %24 = vector.multi_reduction <add>, %23, %cst_11 [1] : vector<5x5xf32> to vector<5xf32>
    %25 = vector.shape_cast %24 : vector<5xf32> to vector<5x1xf32>
    %26 = vector.broadcast %25 : vector<5x1xf32> to vector<5x5xf32>
    %27 = arith.divf %23, %26 : vector<5x5xf32>
    %28 = arith.truncf %27 : vector<5x5xf32> to vector<5x5xbf16>
    %cst_12 = arith.constant dense<0.000000e+00> : vector<5x32xf32>
    %29 = tpu.matmul %28, %17, %cst_12 {dimension_numbers = #tpu.dot_dimension_numbers<[1], [0], [0], [1], [0, 0, 1, 1], [], []>} : vector<5x5xbf16>, vector<5x32xbf16>, vector<5x32xf32> -> vector<5x32xf32>
    %c0_13 = arith.constant 0 : index
    %c0_14 = arith.constant 0 : index
    %30 = vector.load %arg12[%c0_13, %c0_14] : memref<5x128xf32, #tpu.memory_space<vmem>>, vector<5x128xf32>
    %31 = arith.truncf %29 : vector<5x32xf32> to vector<5x32xbf16>
    %c0_15 = arith.constant 0 : index
    %c0_16 = arith.constant 0 : index
    %c0_17 = arith.constant 0 : index
    %32 = vector.load %arg6[%c0_15, %c0_16, %c0_17] : memref<1x32x128xbf16, #tpu.memory_space<vmem>>, vector<1x32x128xbf16>
    %33 = vector.shape_cast %32 : vector<1x32x128xbf16> to vector<32x128xbf16>
    %cst_18 = arith.constant dense<0.000000e+00> : vector<5x128xf32>
    %34 = tpu.matmul %31, %33, %cst_18 {dimension_numbers = #tpu.dot_dimension_numbers<[1], [0], [0], [1], [0, 0, 1, 1], [], []>} : vector<5x32xbf16>, vector<32x128xbf16>, vector<5x128xf32> -> vector<5x128xf32>
    %35 = arith.addf %30, %34 : vector<5x128xf32>
    %c0_19 = arith.constant 0 : index
    %c0_20 = arith.constant 0 : index
    %36 = vector.load %arg12[%c0_19, %c0_20] : memref<5x128xf32, #tpu.memory_space<vmem>>, vector<5x128xf32>
    tpu.vector_store %arg12[%c0_19, %c0_20], %35 {strides = array<i32>} : memref<5x128xf32, #tpu.memory_space<vmem>>, vector<5x128xf32>,
    %c3_i32 = arith.constant 3 : i32
    %37 = arith.cmpi eq, %arg1, %c3_i32 : i32
    %38 = arith.extui %37 : i1 to i32
    %c0_i32_21 = arith.constant 0 : i32
    %39 = arith.cmpi ne, %38, %c0_i32_21 : i32
    scf.if %39 {
      %c0_22 = arith.constant 0 : index
      %c0_23 = arith.constant 0 : index
      %40 = vector.load %arg12[%c0_22, %c0_23] : memref<5x128xf32, #tpu.memory_space<vmem>>, vector<5x128xf32>
      %c0_24 = arith.constant 0 : index
      %c0_25 = arith.constant 0 : index
      %41 = vector.load %arg7[%c0_24, %c0_25] : memref<1x128xf32, #tpu.memory_space<vmem>>, vector<1x128xf32>
      %42 = vector.broadcast %41 : vector<1x128xf32> to vector<5x128xf32>
      %43 = arith.addf %40, %42 : vector<5x128xf32>
      %c0_26 = arith.constant 0 : index
      %c0_27 = arith.constant 0 : index
      %c0_28 = arith.constant 0 : index
      %44 = vector.load %arg3[%c0_26, %c0_27, %c0_28] : memref<1x5x128xf32, #tpu.memory_space<vmem>>, vector<1x5x128xf32>
      %45 = vector.shape_cast %44 : vector<1x5x128xf32> to vector<5x128xf32>
      %46 = arith.addf %43, %45 : vector<5x128xf32>
      %cst_29 = arith.constant dense<0.000000e+00> : vector<5xf32>
      %47 = vector.multi_reduction <add>, %46, %cst_29 [1] : vector<5x128xf32> to vector<5xf32>
      %48 = vector.shape_cast %47 : vector<5xf32> to vector<5x1xf32>
      %cst_30 = arith.constant 1.280000e+02 : f32
      %49 = vector.broadcast %cst_30 : f32 to vector<5x1xf32>
      %50 = arith.divf %48, %49 : vector<5x1xf32>
      %51 = vector.broadcast %50 : vector<5x1xf32> to vector<5x128xf32>
      %52 = arith.subf %46, %51 : vector<5x128xf32>
      %53 = arith.mulf %52, %52 : vector<5x128xf32>
      %cst_31 = arith.constant dense<0.000000e+00> : vector<5xf32>
      %54 = vector.multi_reduction <add>, %53, %cst_31 [1] : vector<5x128xf32> to vector<5xf32>
      %55 = vector.shape_cast %54 : vector<5xf32> to vector<5x1xf32>
      %cst_32 = arith.constant 1.280000e+02 : f32
      %56 = vector.broadcast %cst_32 : f32 to vector<5x1xf32>
      %57 = arith.divf %55, %56 : vector<5x1xf32>
      %cst_33 = arith.constant 9.99999974E-6 : f32
      %58 = vector.broadcast %cst_33 : f32 to vector<5x1xf32>
      %59 = arith.addf %57, %58 : vector<5x1xf32>
      %60 = math.rsqrt %59 : vector<5x1xf32>
      %61 = vector.broadcast %60 : vector<5x1xf32> to vector<5x128xf32>
      %62 = arith.mulf %52, %61 : vector<5x128xf32>
      %c0_34 = arith.constant 0 : index
      %c0_35 = arith.constant 0 : index
      %63 = vector.load %arg8[%c0_34, %c0_35] : memref<1x128xf32, #tpu.memory_space<vmem>>, vector<1x128xf32>
      %64 = vector.broadcast %63 : vector<1x128xf32> to vector<5x128xf32>
      %65 = arith.mulf %62, %64 : vector<5x128xf32>
      %c0_36 = arith.constant 0 : index
      %c0_37 = arith.constant 0 : index
      %66 = vector.load %arg9[%c0_36, %c0_37] : memref<1x128xf32, #tpu.memory_space<vmem>>, vector<1x128xf32>
      %67 = vector.broadcast %66 : vector<1x128xf32> to vector<5x128xf32>
      %68 = arith.addf %65, %67 : vector<5x128xf32>
      %c0_38 = arith.constant 0 : index
      %c0_39 = arith.constant 0 : index
      %c0_40 = arith.constant 0 : index
      %69 = vector.load %arg10[%c0_38, %c0_39, %c0_40] : memref<1x5x128xf32, #tpu.memory_space<vmem>>, vector<1x5x128xf32>
      %70 = vector.shape_cast %69 : vector<1x5x128xf32> to vector<5x128xf32>
      %71 = vector.shape_cast %68 : vector<5x128xf32> to vector<1x5x128xf32>
      tpu.vector_store %arg10[%c0_38, %c0_39, %c0_40], %71 {strides = array<i32>} : memref<1x5x128xf32, #tpu.memory_space<vmem>>, vector<1x5x128xf32>,
      %72 = arith.truncf %68 : vector<5x128xf32> to vector<5x128xbf16>
      %c0_41 = arith.constant 0 : index
      %c0_42 = arith.constant 0 : index
      %c0_43 = arith.constant 0 : index
      %73 = vector.load %arg11[%c0_41, %c0_42, %c0_43] : memref<1x5x128xbf16, #tpu.memory_space<vmem>>, vector<1x5x128xbf16>
      %74 = vector.shape_cast %73 : vector<1x5x128xbf16> to vector<5x128xbf16>
      %75 = vector.shape_cast %72 : vector<5x128xbf16> to vector<1x5x128xbf16>
      tpu.vector_store %arg11[%c0_41, %c0_42, %c0_43], %75 {strides = array<i32>} : memref<1x5x128xbf16, #tpu.memory_space<vmem>>, vector<1x5x128xbf16>,
    } else {
    }
    return
  }
  func.func @transform_0(%arg0: i32, %arg1: i32) -> (i32, i32, i32) {
    %c0_i32 = arith.constant 0 : i32
    %c0_i32_0 = arith.constant 0 : i32
    %c0_i32_1 = arith.constant 0 : i32
    return %arg0, %c0_i32, %c0_i32_0 : i32, i32, i32
  }
  func.func @transform_1(%arg0: i32, %arg1: i32) -> (i32, i32, i32) {
    %c0_i32 = arith.constant 0 : i32
    %c0_i32_0 = arith.constant 0 : i32
    %c0_i32_1 = arith.constant 0 : i32
    return %arg0, %c0_i32, %c0_i32_0 : i32, i32, i32
  }
  func.func @transform_2(%arg0: i32, %arg1: i32) -> (i32, i32, i32) {
    %c0_i32 = arith.constant 0 : i32
    %c0_i32_0 = arith.constant 0 : i32
    %c0_i32_1 = arith.constant 0 : i32
    return %arg1, %c0_i32, %c0_i32_0 : i32, i32, i32
  }
  func.func @transform_3(%arg0: i32, %arg1: i32) -> (i32, i32, i32) {
    %c0_i32 = arith.constant 0 : i32
    %c0_i32_0 = arith.constant 0 : i32
    %c0_i32_1 = arith.constant 0 : i32
    return %arg1, %c0_i32, %c0_i32_0 : i32, i32, i32
  }
  func.func @transform_4(%arg0: i32, %arg1: i32) -> (i32, i32, i32) {
    %c0_i32 = arith.constant 0 : i32
    %c0_i32_0 = arith.constant 0 : i32
    %c0_i32_1 = arith.constant 0 : i32
    return %arg1, %c0_i32, %c0_i32_0 : i32, i32, i32
  }
  func.func @transform_5(%arg0: i32, %arg1: i32) -> (i32, i32) {
    %c0_i32 = arith.constant 0 : i32
    %c0_i32_0 = arith.constant 0 : i32
    %c0_i32_1 = arith.constant 0 : i32
    return %c0_i32, %c0_i32_0 : i32, i32
  }
  func.func @transform_6(%arg0: i32, %arg1: i32) -> (i32, i32) {
    %c0_i32 = arith.constant 0 : i32
    %c0_i32_0 = arith.constant 0 : i32
    %c0_i32_1 = arith.constant 0 : i32
    return %c0_i32, %c0_i32_0 : i32, i32
  }
  func.func @transform_7(%arg0: i32, %arg1: i32) -> (i32, i32) {
    %c0_i32 = arith.constant 0 : i32
    %c0_i32_0 = arith.constant 0 : i32
    %c0_i32_1 = arith.constant 0 : i32
    return %c0_i32, %c0_i32_0 : i32, i32
  }
  func.func @transform_8(%arg0: i32, %arg1: i32) -> (i32, i32, i32) {
    %c0_i32 = arith.constant 0 : i32
    %c0_i32_0 = arith.constant 0 : i32
    %c0_i32_1 = arith.constant 0 : i32
    return %arg0, %c0_i32, %c0_i32_0 : i32, i32, i32
  }
  func.func @transform_9(%arg0: i32, %arg1: i32) -> (i32, i32, i32) {
    %c0_i32 = arith.constant 0 : i32
    %c0_i32_0 = arith.constant 0 : i32
    %c0_i32_1 = arith.constant 0 : i32
    return %arg0, %c0_i32, %c0_i32_0 : i32, i32, i32
  }
}

module attributes {stable_mosaic.version = 11 : i64} {
  func.func @_ffn_kernel(%arg0: i32, %arg1: i32, %arg2: memref<10x128xbf16, #tpu.memory_space<vmem>>, %arg3: memref<10x128xf32, #tpu.memory_space<vmem>>, %arg4: memref<128x512xbf16, #tpu.memory_space<vmem>>, %arg5: memref<1x512xf32, #tpu.memory_space<vmem>>, %arg6: memref<512x128xbf16, #tpu.memory_space<vmem>>, %arg7: memref<1x128xf32, #tpu.memory_space<vmem>>, %arg8: memref<1x128xf32, #tpu.memory_space<vmem>>, %arg9: memref<1x128xf32, #tpu.memory_space<vmem>>, %arg10: memref<10x128xf32, #tpu.memory_space<vmem>>, %arg11: memref<10x128xbf16, #tpu.memory_space<vmem>>, %arg12: memref<10x512xf32, #tpu.memory_space<vmem>>) attributes {dimension_semantics = [#tpu.dimension_semantics<parallel>, #tpu.dimension_semantics<arbitrary>], iteration_bounds = array<i64: 1, 1>, scalar_prefetch = 0 : i64, scratch_operands = 1 : i64, tpu.core_type = #tpu.core_type<tc>, window_params = [{transform_indices = @transform_0, window_bounds = array<i64: 10, 128>}, {transform_indices = @transform_1, window_bounds = array<i64: 10, 128>}, {transform_indices = @transform_2, window_bounds = array<i64: 128, 512>}, {pipeline_mode = #tpu.pipeline_mode<synchronous>, transform_indices = @transform_3, window_bounds = array<i64: 1, 512>}, {pipeline_mode = #tpu.pipeline_mode<synchronous>, transform_indices = @transform_4, window_bounds = array<i64: 512, 128>}, {pipeline_mode = #tpu.pipeline_mode<synchronous>, transform_indices = @transform_5, window_bounds = array<i64: 1, 128>}, {pipeline_mode = #tpu.pipeline_mode<synchronous>, transform_indices = @transform_6, window_bounds = array<i64: 1, 128>}, {pipeline_mode = #tpu.pipeline_mode<synchronous>, transform_indices = @transform_7, window_bounds = array<i64: 1, 128>}, {transform_indices = @transform_8, window_bounds = array<i64: 10, 128>}, {transform_indices = @transform_9, window_bounds = array<i64: 10, 128>}]} {
    %c0_i32 = arith.constant 0 : i32
    %0 = arith.cmpi eq, %arg1, %c0_i32 : i32
    %1 = arith.extui %0 : i1 to i32
    %c0_i32_0 = arith.constant 0 : i32
    %2 = arith.cmpi ne, %1, %c0_i32_0 : i32
    scf.if %2 {
      %cst_10 = arith.constant 0.000000e+00 : f32
      %12 = vector.broadcast %cst_10 : f32 to vector<10x512xf32>
      %c0_11 = arith.constant 0 : index
      %c0_12 = arith.constant 0 : index
      %13 = vector.load %arg12[%c0_11, %c0_12] : memref<10x512xf32, #tpu.memory_space<vmem>>, vector<10x512xf32>
      tpu.vector_store %arg12[%c0_11, %c0_12], %12 {strides = array<i32>} : memref<10x512xf32, #tpu.memory_space<vmem>>, vector<10x512xf32>,
    } else {
    }
    %c0 = arith.constant 0 : index
    %c0_1 = arith.constant 0 : index
    %3 = vector.load %arg12[%c0, %c0_1] : memref<10x512xf32, #tpu.memory_space<vmem>>, vector<10x512xf32>
    %c0_2 = arith.constant 0 : index
    %c0_3 = arith.constant 0 : index
    %4 = vector.load %arg2[%c0_2, %c0_3] : memref<10x128xbf16, #tpu.memory_space<vmem>>, vector<10x128xbf16>
    %c0_4 = arith.constant 0 : index
    %c0_5 = arith.constant 0 : index
    %5 = vector.load %arg4[%c0_4, %c0_5] : memref<128x512xbf16, #tpu.memory_space<vmem>>, vector<128x512xbf16>
    %cst = arith.constant dense<0.000000e+00> : vector<10x512xf32>
    %6 = tpu.matmul %4, %5, %cst {dimension_numbers = #tpu.dot_dimension_numbers<[1], [0], [0], [1], [0, 0, 1, 1], [], []>} : vector<10x128xbf16>, vector<128x512xbf16>, vector<10x512xf32> -> vector<10x512xf32>
    %7 = arith.addf %3, %6 : vector<10x512xf32>
    %c0_6 = arith.constant 0 : index
    %c0_7 = arith.constant 0 : index
    %8 = vector.load %arg12[%c0_6, %c0_7] : memref<10x512xf32, #tpu.memory_space<vmem>>, vector<10x512xf32>
    tpu.vector_store %arg12[%c0_6, %c0_7], %7 {strides = array<i32>} : memref<10x512xf32, #tpu.memory_space<vmem>>, vector<10x512xf32>,
    %c0_i32_8 = arith.constant 0 : i32
    %9 = arith.cmpi eq, %arg1, %c0_i32_8 : i32
    %10 = arith.extui %9 : i1 to i32
    %c0_i32_9 = arith.constant 0 : i32
    %11 = arith.cmpi ne, %10, %c0_i32_9 : i32
    scf.if %11 {
      %c0_10 = arith.constant 0 : index
      %c0_11 = arith.constant 0 : index
      %12 = vector.load %arg12[%c0_10, %c0_11] : memref<10x512xf32, #tpu.memory_space<vmem>>, vector<10x512xf32>
      %c0_12 = arith.constant 0 : index
      %c0_13 = arith.constant 0 : index
      %13 = vector.load %arg5[%c0_12, %c0_13] : memref<1x512xf32, #tpu.memory_space<vmem>>, vector<1x512xf32>
      %14 = vector.broadcast %13 : vector<1x512xf32> to vector<10x512xf32>
      %15 = arith.addf %12, %14 : vector<10x512xf32>
      %cst_14 = arith.constant 0.000000e+00 : f32
      %16 = vector.broadcast %cst_14 : f32 to vector<10x512xf32>
      %17 = arith.maximumf %15, %16 : vector<10x512xf32>
      %18 = arith.truncf %17 : vector<10x512xf32> to vector<10x512xbf16>
      %c0_15 = arith.constant 0 : index
      %c0_16 = arith.constant 0 : index
      %19 = vector.load %arg6[%c0_15, %c0_16] : memref<512x128xbf16, #tpu.memory_space<vmem>>, vector<512x128xbf16>
      %cst_17 = arith.constant dense<0.000000e+00> : vector<10x128xf32>
      %20 = tpu.matmul %18, %19, %cst_17 {dimension_numbers = #tpu.dot_dimension_numbers<[1], [0], [0], [1], [0, 0, 1, 1], [], []>} : vector<10x512xbf16>, vector<512x128xbf16>, vector<10x128xf32> -> vector<10x128xf32>
      %c0_18 = arith.constant 0 : index
      %c0_19 = arith.constant 0 : index
      %21 = vector.load %arg7[%c0_18, %c0_19] : memref<1x128xf32, #tpu.memory_space<vmem>>, vector<1x128xf32>
      %22 = vector.broadcast %21 : vector<1x128xf32> to vector<10x128xf32>
      %23 = arith.addf %20, %22 : vector<10x128xf32>
      %c0_20 = arith.constant 0 : index
      %c0_21 = arith.constant 0 : index
      %24 = vector.load %arg3[%c0_20, %c0_21] : memref<10x128xf32, #tpu.memory_space<vmem>>, vector<10x128xf32>
      %25 = arith.addf %23, %24 : vector<10x128xf32>
      %cst_22 = arith.constant dense<0.000000e+00> : vector<10xf32>
      %26 = vector.multi_reduction <add>, %25, %cst_22 [1] : vector<10x128xf32> to vector<10xf32>
      %27 = vector.shape_cast %26 : vector<10xf32> to vector<10x1xf32>
      %cst_23 = arith.constant 1.280000e+02 : f32
      %28 = vector.broadcast %cst_23 : f32 to vector<10x1xf32>
      %29 = arith.divf %27, %28 : vector<10x1xf32>
      %30 = vector.broadcast %29 : vector<10x1xf32> to vector<10x128xf32>
      %31 = arith.subf %25, %30 : vector<10x128xf32>
      %32 = arith.mulf %31, %31 : vector<10x128xf32>
      %cst_24 = arith.constant dense<0.000000e+00> : vector<10xf32>
      %33 = vector.multi_reduction <add>, %32, %cst_24 [1] : vector<10x128xf32> to vector<10xf32>
      %34 = vector.shape_cast %33 : vector<10xf32> to vector<10x1xf32>
      %cst_25 = arith.constant 1.280000e+02 : f32
      %35 = vector.broadcast %cst_25 : f32 to vector<10x1xf32>
      %36 = arith.divf %34, %35 : vector<10x1xf32>
      %cst_26 = arith.constant 9.99999974E-6 : f32
      %37 = vector.broadcast %cst_26 : f32 to vector<10x1xf32>
      %38 = arith.addf %36, %37 : vector<10x1xf32>
      %39 = math.rsqrt %38 : vector<10x1xf32>
      %40 = vector.broadcast %39 : vector<10x1xf32> to vector<10x128xf32>
      %41 = arith.mulf %31, %40 : vector<10x128xf32>
      %c0_27 = arith.constant 0 : index
      %c0_28 = arith.constant 0 : index
      %42 = vector.load %arg8[%c0_27, %c0_28] : memref<1x128xf32, #tpu.memory_space<vmem>>, vector<1x128xf32>
      %43 = vector.broadcast %42 : vector<1x128xf32> to vector<10x128xf32>
      %44 = arith.mulf %41, %43 : vector<10x128xf32>
      %c0_29 = arith.constant 0 : index
      %c0_30 = arith.constant 0 : index
      %45 = vector.load %arg9[%c0_29, %c0_30] : memref<1x128xf32, #tpu.memory_space<vmem>>, vector<1x128xf32>
      %46 = vector.broadcast %45 : vector<1x128xf32> to vector<10x128xf32>
      %47 = arith.addf %44, %46 : vector<10x128xf32>
      %c0_31 = arith.constant 0 : index
      %c0_32 = arith.constant 0 : index
      %48 = vector.load %arg10[%c0_31, %c0_32] : memref<10x128xf32, #tpu.memory_space<vmem>>, vector<10x128xf32>
      tpu.vector_store %arg10[%c0_31, %c0_32], %47 {strides = array<i32>} : memref<10x128xf32, #tpu.memory_space<vmem>>, vector<10x128xf32>,
      %49 = arith.truncf %47 : vector<10x128xf32> to vector<10x128xbf16>
      %c0_33 = arith.constant 0 : index
      %c0_34 = arith.constant 0 : index
      %50 = vector.load %arg11[%c0_33, %c0_34] : memref<10x128xbf16, #tpu.memory_space<vmem>>, vector<10x128xbf16>
      tpu.vector_store %arg11[%c0_33, %c0_34], %49 {strides = array<i32>} : memref<10x128xbf16, #tpu.memory_space<vmem>>, vector<10x128xbf16>,
    } else {
    }
    return
  }
  func.func @transform_0(%arg0: i32, %arg1: i32) -> (i32, i32) {
    %c0_i32 = arith.constant 0 : i32
    return %arg0, %arg1 : i32, i32
  }
  func.func @transform_1(%arg0: i32, %arg1: i32) -> (i32, i32) {
    %c0_i32 = arith.constant 0 : i32
    %c0_i32_0 = arith.constant 0 : i32
    return %arg0, %c0_i32 : i32, i32
  }
  func.func @transform_2(%arg0: i32, %arg1: i32) -> (i32, i32) {
    %c0_i32 = arith.constant 0 : i32
    %c0_i32_0 = arith.constant 0 : i32
    return %arg1, %c0_i32 : i32, i32
  }
  func.func @transform_3(%arg0: i32, %arg1: i32) -> (i32, i32) {
    %c0_i32 = arith.constant 0 : i32
    %c0_i32_0 = arith.constant 0 : i32
    %c0_i32_1 = arith.constant 0 : i32
    return %c0_i32, %c0_i32_0 : i32, i32
  }
  func.func @transform_4(%arg0: i32, %arg1: i32) -> (i32, i32) {
    %c0_i32 = arith.constant 0 : i32
    %c0_i32_0 = arith.constant 0 : i32
    %c0_i32_1 = arith.constant 0 : i32
    return %c0_i32, %c0_i32_0 : i32, i32
  }
  func.func @transform_5(%arg0: i32, %arg1: i32) -> (i32, i32) {
    %c0_i32 = arith.constant 0 : i32
    %c0_i32_0 = arith.constant 0 : i32
    %c0_i32_1 = arith.constant 0 : i32
    return %c0_i32, %c0_i32_0 : i32, i32
  }
  func.func @transform_6(%arg0: i32, %arg1: i32) -> (i32, i32) {
    %c0_i32 = arith.constant 0 : i32
    %c0_i32_0 = arith.constant 0 : i32
    %c0_i32_1 = arith.constant 0 : i32
    return %c0_i32, %c0_i32_0 : i32, i32
  }
  func.func @transform_7(%arg0: i32, %arg1: i32) -> (i32, i32) {
    %c0_i32 = arith.constant 0 : i32
    %c0_i32_0 = arith.constant 0 : i32
    %c0_i32_1 = arith.constant 0 : i32
    return %c0_i32, %c0_i32_0 : i32, i32
  }
  func.func @transform_8(%arg0: i32, %arg1: i32) -> (i32, i32) {
    %c0_i32 = arith.constant 0 : i32
    %c0_i32_0 = arith.constant 0 : i32
    return %arg0, %c0_i32 : i32, i32
  }
  func.func @transform_9(%arg0: i32, %arg1: i32) -> (i32, i32) {
    %c0_i32 = arith.constant 0 : i32
    %c0_i32_0 = arith.constant 0 : i32
    return %arg0, %c0_i32 : i32, i32
  }
}

</mosaic_0001>

<llo_original>
// kernel: ast_forward.5
$region0: #{ast_forward.5}
  #allocation0 [shape = 'u32[]', space=smem, size = 0x4, offset = 0x4, fixed_abs, tag = 'smem constant byte address 0x4 - core index']
  #allocation1 [shape = 'u32[144,128]{1,0:T(1,128)}', space=vmem, size = 0x12000, scoped, tag = 'internal scratch']
  #allocation2 [shape = 'f32[8,128]{1,0:T(8,128)}', space=vmem, size = 0x1000, scoped, tag = 'scratch operand']
  %s0 = inlined_call_operand.hbm [shape: bf16[8,256], index: 0, kind: input, shape index: {}]
  %s1 = inlined_call_operand.hbm [shape: bf16[256,128], index: 1, kind: input, shape index: {}]
  %s2 = inlined_call_operand.hbm [shape: f32[1,128], index: 2, kind: input, shape index: {}]
  %s3 = inlined_call_operand.hbm [shape: f32[8,128], index: 3, kind: output, shape index: {}]
  %s4 = sld [smem:[#allocation0]]
  $region42: #{ast_forward.5} parent=0
    _
  %s6 = ssub.s32 1, %s4
  %s7 = scalar_select 0, %s6, %s4
  $region1: #{ast_forward.5} parent=0
    #allocation3 [shape = 'u8[4096]{0}', space=vmem, size = 0x1000, scoped, tag = 'input window, operand 0, single buffered']
    #allocation4 [shape = 's32[1]{0}', space=sflag, size = 0x4, scoped, tag = 'scoped memory for ast_forward.5']
    #allocation5 [shape = 's32[1]{0}', space=sflag, size = 0x4, scoped, tag = 'scoped memory for ast_forward.5']
    #allocation6 [shape = 'u8[65536]{0}', space=vmem, size = 0x10000, scoped, tag = 'input window, operand 1, single buffered']
    #allocation7 [shape = 's32[1]{0}', space=sflag, size = 0x4, scoped, tag = 'scoped memory for ast_forward.5']
    #allocation8 [shape = 'u8[512]{0}', space=vmem, size = 0x400, scoped, tag = 'input window, operand 2, single buffered']
    #allocation9 [shape = 'u8[4096]{0}', space=vmem, size = 0x1000, scoped, tag = 'output window, operand 0, single buffered']
    %8 = vsyncpa [#allocation4], 0
    %9 = vsyncpa [#allocation7], 0
    %10 = vsyncpa [#allocation5], 0
    // Predicated region
    $region2: #{ast_forward.5} parent=1 // pred_check
      _
    $region3: #{ast_forward.5} parent=1 // pred_check_branch
      %12 = sbr.rel (0) target = $region5
    $region4: #{ast_forward.5} parent=1 // pred_region
      %s14 = ssub.s32 128, 128
      %15 = vsyncadd [#allocation4], %s14
      %s17 = sshll.u32 [#allocation3], 4
      %s18 = int_to_ptr.vmem [resolvable:$true] %s17
      %20 = dma.hbm_to_vmem [thread:$0]  %s0, 128, %s18, [#allocation4]
    $region5: #{ast_forward.5} parent=1 // pred_fallthru
      _
    // Predicated region
    $region6: #{ast_forward.5} parent=1 // pred_check
      _
    $region7: #{ast_forward.5} parent=1 // pred_check_branch
      %22 = sbr.rel (0) target = $region9
    $region8: #{ast_forward.5} parent=1 // pred_region
      %s24 = ssub.s32 2048, 2048
      %25 = vsyncadd [#allocation7], %s24
      %s26 = sshll.u32 [#allocation6], 4
      %s27 = int_to_ptr.vmem [resolvable:$true] %s26
      %32 = dma.hbm_to_vmem [thread:$0]  %s1, 2048, %s27, [#allocation7], 64, 64, 4
    $region9: #{ast_forward.5} parent=1 // pred_fallthru
      _
    // Predicated region
    $region10: #{ast_forward.5} parent=1 // pred_check
      _
    $region11: #{ast_forward.5} parent=1 // pred_check_branch
      %34 = sbr.rel (0) target = $region13
    $region12: #{ast_forward.5} parent=1 // pred_region
      %s36 = ssub.s32 16, 16
      %37 = vsyncadd [#allocation7], %s36
      %s39 = sshll.u32 [#allocation8], 4
      %s40 = int_to_ptr.vmem [resolvable:$true] %s39
      %42 = dma.hbm_to_vmem [thread:$0]  %s2, 16, %s40, [#allocation7]
    $region13: #{ast_forward.5} parent=1 // pred_fallthru
      _
    // Predicated region
    $region14: #{ast_forward.5} parent=1 // pred_check
      _
    $region15: #{ast_forward.5} parent=1 // pred_check_branch
      %44 = sbr.rel (0) target = $region17
    $region16: #{ast_forward.5} parent=1 // pred_region
      %45 = dma.done [#allocation4], 128
    $region17: #{ast_forward.5} parent=1 // pred_fallthru
      _
    // Predicated region
    $region18: #{ast_forward.5} parent=1 // pred_check
      _
    $region19: #{ast_forward.5} parent=1 // pred_check_branch
      %47 = sbr.rel (0) target = $region21
    $region20: #{ast_forward.5} parent=1 // pred_region
      %48 = dma.done [#allocation7], 2048
    $region21: #{ast_forward.5} parent=1 // pred_fallthru
      _
    // Predicated region
    $region22: #{ast_forward.5} parent=1 // pred_check
      _
    $region23: #{ast_forward.5} parent=1 // pred_check_branch
      %50 = sbr.rel (0) target = $region25
    $region24: #{ast_forward.5} parent=1 // pred_region
      %51 = dma.done [#allocation7], 16
    $region25: #{ast_forward.5} parent=1 // pred_fallthru
      _
    %p53 = scmp.eq.s32.totalorder 0, 0
    // Predicated region
    $region26: #{ast_forward.5} parent=1 // pred_check
      %p54 = pneg %p53
    $region27: #{ast_forward.5} parent=1 // pred_check_branch
      %56 = sbr.rel (%p54) target = $region29
    $region28: #{ast_forward.5} parent=1 // pred_region
      %57 = vst [vmem:[#allocation2] sm:$0xff] 0.0
    $region29: #{ast_forward.5} parent=1 // pred_fallthru
      _
    %v58 = vld [vmem:[#allocation2] sm:$0xff]
    %v59 = vld [vmem:[#allocation3] sm:$0xff]
    %v60 = vld [vmem:[#allocation6] sm:$0xf]
    %v61 = vld [vmem:[#allocation6 + $0x4] sm:$0xf]
    %v62 = vld [vmem:[#allocation6 + $0x8] sm:$0xf]
    %v63 = vld [vmem:[#allocation6 + $0xc] sm:$0xf]
    %v64 = vld [vmem:[#allocation6 + $0x10] sm:$0xf]
    %v65 = vld [vmem:[#allocation6 + $0x14] sm:$0xf]
    %v66 = vld [vmem:[#allocation6 + $0x18] sm:$0xf]
    %v67 = vld [vmem:[#allocation6 + $0x1c] sm:$0xf]
    %v68 = vld [vmem:[#allocation6 + $0x20] sm:$0xf]
    %v69 = vld [vmem:[#allocation6 + $0x24] sm:$0xf]
    %v70 = vld [vmem:[#allocation6 + $0x28] sm:$0xf]
    %v71 = vld [vmem:[#allocation6 + $0x2c] sm:$0xf]
    %v72 = vld [vmem:[#allocation6 + $0x30] sm:$0xf]
    %v73 = vld [vmem:[#allocation6 + $0x34] sm:$0xf]
    %v74 = vld [vmem:[#allocation6 + $0x38] sm:$0xf]
    %v75 = vld [vmem:[#allocation6 + $0x3c] sm:$0xf]
    %v76 = vld [vmem:[#allocation6 + $0x40] sm:$0xf]
    %v77 = vld [vmem:[#allocation6 + $0x44] sm:$0xf]
    %v78 = vld [vmem:[#allocation6 + $0x48] sm:$0xf]
    %v79 = vld [vmem:[#allocation6 + $0x4c] sm:$0xf]
    %v80 = vld [vmem:[#allocation6 + $0x50] sm:$0xf]
    %v81 = vld [vmem:[#allocation6 + $0x54] sm:$0xf]
    %v82 = vld [vmem:[#allocation6 + $0x58] sm:$0xf]
    %v83 = vld [vmem:[#allocation6 + $0x5c] sm:$0xf]
    %v84 = vld [vmem:[#allocation6 + $0x60] sm:$0xf]
    %v85 = vld [vmem:[#allocation6 + $0x64] sm:$0xf]
    %v86 = vld [vmem:[#allocation6 + $0x68] sm:$0xf]
    %v87 = vld [vmem:[#allocation6 + $0x6c] sm:$0xf]
    %v88 = vld [vmem:[#allocation6 + $0x70] sm:$0xf]
    %v89 = vld [vmem:[#allocation6 + $0x74] sm:$0xf]
    %v90 = vld [vmem:[#allocation6 + $0x78] sm:$0xf]
    %v91 = vld [vmem:[#allocation6 + $0x7c] sm:$0xf]
    %v93 = vunpack.c.l.b16 %v59
    %v94 = vunpack.c.h.b16 %v59
    %v95 = vpack.c.b16 %v93, %v93
    %v96 = vpack.c.b16 %v94, %v94
    %v131 = vunpack.c.l.b16 %v60
    %v132 = vunpack.c.l.b16 %v61
    %v133 = vunpack.c.l.b16 %v62
    %v134 = vunpack.c.l.b16 %v63
    %v135 = vunpack.c.l.b16 %v64
    %v136 = vunpack.c.l.b16 %v65
    %v137 = vunpack.c.l.b16 %v66
    %v138 = vunpack.c.l.b16 %v67
    %v139 = vunpack.c.l.b16 %v68
    %v140 = vunpack.c.l.b16 %v69
    %v141 = vunpack.c.l.b16 %v70
    %v142 = vunpack.c.l.b16 %v71
    %v143 = vunpack.c.l.b16 %v72
    %v144 = vunpack.c.l.b16 %v73
    %v145 = vunpack.c.l.b16 %v74
    %v146 = vunpack.c.l.b16 %v75
    %v147 = vunpack.c.l.b16 %v76
    %v148 = vunpack.c.l.b16 %v77
    %v149 = vunpack.c.l.b16 %v78
    %v150 = vunpack.c.l.b16 %v79
    %v151 = vunpack.c.l.b16 %v80
    %v152 = vunpack.c.l.b16 %v81
    %v153 = vunpack.c.l.b16 %v82
    %v154 = vunpack.c.l.b16 %v83
    %v155 = vunpack.c.l.b16 %v84
    %v156 = vunpack.c.l.b16 %v85
    %v157 = vunpack.c.l.b16 %v86
    %v158 = vunpack.c.l.b16 %v87
    %v159 = vunpack.c.l.b16 %v88
    %v160 = vunpack.c.l.b16 %v89
    %v161 = vunpack.c.l.b16 %v90
    %v162 = vunpack.c.l.b16 %v91
    %v163 = vpack.c.b16 %v132, %v131
    %v164 = vpack.c.b16 %v134, %v133
    %v165 = vpack.c.b16 %v136, %v135
    %v166 = vpack.c.b16 %v138, %v137
    %v167 = vpack.c.b16 %v140, %v139
    %v168 = vpack.c.b16 %v142, %v141
    %v169 = vpack.c.b16 %v144, %v143
    %v170 = vpack.c.b16 %v146, %v145
    %v171 = vpack.c.b16 %v148, %v147
    %v172 = vpack.c.b16 %v150, %v149
    %v173 = vpack.c.b16 %v152, %v151
    %v174 = vpack.c.b16 %v154, %v153
    %v175 = vpack.c.b16 %v156, %v155
    %v176 = vpack.c.b16 %v158, %v157
    %v177 = vpack.c.b16 %v160, %v159
    %v178 = vpack.c.b16 %v162, %v161
    %195 = vmatprep.subr.bf16.mxu0 0
    %196 = vmatpush1.bf16.msra.mxu0 %v163
    %197 = vmatprep.subr.bf16.mxu0 0
    %198 = vmatpush1.bf16.msra.mxu0 %v164
    %199 = vmatprep.subr.bf16.mxu0 0
    %200 = vmatpush1.bf16.msra.mxu0 %v165
    %201 = vmatprep.subr.bf16.mxu0 0
    %202 = vmatpush1.bf16.msra.mxu0 %v166
    %203 = vmatprep.subr.bf16.mxu0 0
    %204 = vmatpush1.bf16.msra.mxu0 %v167
    %205 = vmatprep.subr.bf16.mxu0 0
    %206 = vmatpush1.bf16.msra.mxu0 %v168
    %207 = vmatprep.subr.bf16.mxu0 0
    %208 = vmatpush1.bf16.msra.mxu0 %v169
    %209 = vmatprep.subr.bf16.mxu0 0
    %210 = vmatpush1.bf16.msra.mxu0 %v170
    %211 = vmatprep.subr.bf16.mxu0 0
    %212 = vmatpush1.bf16.msra.mxu0 %v171
    %213 = vmatprep.subr.bf16.mxu0 0
    %214 = vmatpush1.bf16.msra.mxu0 %v172
    %215 = vmatprep.subr.bf16.mxu0 0
    %216 = vmatpush1.bf16.msra.mxu0 %v173
    %217 = vmatprep.subr.bf16.mxu0 0
    %218 = vmatpush1.bf16.msra.mxu0 %v174
    %219 = vmatprep.subr.bf16.mxu0 0
    %220 = vmatpush1.bf16.msra.mxu0 %v175
    %221 = vmatprep.subr.bf16.mxu0 0
    %222 = vmatpush1.bf16.msra.mxu0 %v176
    %223 = vmatprep.subr.bf16.mxu0 0
    %224 = vmatpush1.bf16.msra.mxu0 %v177
    %225 = vmatprep.subr.bf16.mxu0 0
    %226 = vmatpush1.bf16.msra.mxu0 %v178
    %227 = vmatprep.mubr.bf16.mxu0 %v96
    %228 = vmatmul.mubr.bf16.gmra.mrb[0].mxu0 %v95
    %v229 = vpop.f32.mrb[0].mxu0
    %v230 = vadd.f32 0.0, %v229
    %v231 = vpop.f32.mrb[0].mxu0
    %v232 = vpop.f32.mrb[0].mxu0
    %v233 = vpop.f32.mrb[0].mxu0
    %234 = vdwg.mxu0
    %v235 = vadd.f32 %v58, %v230
    %236 = vst [vmem:[#allocation2] sm:$0xff] %v235
    // Predicated region
    $region30: #{ast_forward.5} parent=1 // pred_check
      %p237 = pneg %p53
    $region31: #{ast_forward.5} parent=1 // pred_check_branch
      %239 = sbr.rel (%p237) target = $region33
    $region32: #{ast_forward.5} parent=1 // pred_region
      %v240 = vld [vmem:[#allocation2] sm:$0xff]
      %v241 = vld [vmem:[#allocation8] sm:$0x1]
      %v243 = vlaneseq
      %v244 = vshrl.u32 %v243, 7
      %v245 = vsub.s32 0, %v244
      %v246 = vrot.slane %v241, %v245
      %v248 = vadd.f32 %v240, %v246
      %249 = vst [vmem:[#allocation9] sm:$0xff] %v248
    $region33: #{ast_forward.5} parent=1 // pred_fallthru
      _
    // Predicated region
    $region34: #{ast_forward.5} parent=1 // pred_check
      _
    $region35: #{ast_forward.5} parent=1 // pred_check_branch
      %251 = sbr.rel (0) target = $region37
    $region36: #{ast_forward.5} parent=1 // pred_region
      %s253 = ssub.s32 128, 128
      %254 = vsyncadd [#allocation5], %s253
      %s256 = sshll.u32 [#allocation9], 4
      %s257 = int_to_ptr.vmem [resolvable:$true] %s256
      %259 = dma.vmem_to_hbm [thread:$0]  %s257, 128, %s3, [#allocation5]
    $region37: #{ast_forward.5} parent=1 // pred_fallthru
      _
    // Predicated region
    $region38: #{ast_forward.5} parent=1 // pred_check
      _
    $region39: #{ast_forward.5} parent=1 // pred_check_branch
      %261 = sbr.rel (0) target = $region41
    $region40: #{ast_forward.5} parent=1 // pred_region
      %262 = dma.done [#allocation5], 128
    $region41: #{ast_forward.5} parent=1 // pred_fallthru
      _
    %263 = vsyncpa [#allocation4], 1
    %264 = vsyncpa [#allocation7], 1
    %265 = vsyncpa [#allocation5], 1

// kernel: ast_forward.6
$region0: #{ast_forward.6}
  #allocation0 [shape = 'u32[]', space=smem, size = 0x4, offset = 0x4, fixed_abs, tag = 'smem constant byte address 0x4 - core index']
  #allocation1 [shape = 'u32[144,128]{1,0:T(1,128)}', space=vmem, size = 0x12000, scoped, tag = 'internal scratch']
  #allocation2 [shape = 'f32[5,128]{1,0:T(8,128)}', space=vmem, size = 0x1000, scoped, tag = 'scratch operand']
  %s0 = inlined_call_operand.hbm [shape: bf16[2,5,128], index: 0, kind: input, shape index: {}]
  %s1 = inlined_call_operand.hbm [shape: f32[2,5,128], index: 1, kind: input, shape index: {}]
  %s2 = inlined_call_operand.hbm [shape: bf16[4,128,96], index: 2, kind: input, shape index: {}]
  %s3 = inlined_call_operand.hbm [shape: f32[4,1,96], index: 3, kind: input, shape index: {}]
  %s4 = inlined_call_operand.hbm [shape: bf16[4,32,128], index: 4, kind: input, shape index: {}]
  %s5 = inlined_call_operand.hbm [shape: f32[1,128], index: 5, kind: input, shape index: {}]
  %s6 = inlined_call_operand.hbm [shape: f32[1,128], index: 6, kind: input, shape index: {}]
  %s7 = inlined_call_operand.hbm [shape: f32[1,128], index: 7, kind: input, shape index: {}]
  %s8 = inlined_call_operand.hbm [shape: f32[2,5,128], index: 8, kind: output, shape index: {0}]
  %s9 = inlined_call_operand.hbm [shape: bf16[2,5,128], index: 9, kind: output, shape index: {1}]
  %10 = xla_tuple %s8, %s9
  %s11 = sld [smem:[#allocation0]]
  $region113: #{ast_forward.6} parent=0
    _
  %s13 = ssub.s32 1, %s11
  %s14 = scalar_select 0, %s13, %s11
  $region1: #{ast_forward.6} parent=0
    #allocation3 [shape = 'u8[4096]{0}', space=vmem, size = 0x1000, scoped, tag = 'input window, operand 0']
    #allocation4 [shape = 's32[2]{0}', space=sflag, size = 0x8, scoped, tag = 'scoped memory for ast_forward.6']
    #allocation5 [shape = 's32[2]{0}', space=sflag, size = 0x8, scoped, tag = 'scoped memory for ast_forward.6']
    #allocation6 [shape = 'u8[8192]{0}', space=vmem, size = 0x2000, scoped, tag = 'input window, operand 1']
    #allocation7 [shape = 's32[2]{0}', space=sflag, size = 0x8, scoped, tag = 'scoped memory for ast_forward.6']
    #allocation8 [shape = 'u8[65536]{0}', space=vmem, size = 0x10000, scoped, tag = 'input window, operand 2']
    #allocation9 [shape = 'u8[1024]{0}', space=vmem, size = 0x400, scoped, tag = 'input window, operand 3']
    #allocation10 [shape = 's32[2]{0}', space=sflag, size = 0x8, scoped, tag = 'scoped memory for ast_forward.6']
    #allocation11 [shape = 'u8[16384]{0}', space=vmem, size = 0x4000, scoped, tag = 'input window, operand 4']
    #allocation12 [shape = 'u8[512]{0}', space=vmem, size = 0x400, scoped, tag = 'input window, operand 5, single buffered']
    #allocation13 [shape = 's32[1]{0}', space=sflag, size = 0x4, scoped, tag = 'scoped memory for ast_forward.6']
    #allocation14 [shape = 'u8[512]{0}', space=vmem, size = 0x400, scoped, tag = 'input window, operand 6, single buffered']
    #allocation15 [shape = 'u8[512]{0}', space=vmem, size = 0x400, scoped, tag = 'input window, operand 7, single buffered']
    #allocation16 [shape = 's32[1]{0}', space=sflag, size = 0x4, scoped, tag = 'scoped memory for ast_forward.6']
    #allocation17 [shape = 'u8[8192]{0}', space=vmem, size = 0x2000, scoped, tag = 'output window, operand 0']
    #allocation18 [shape = 'u8[4096]{0}', space=vmem, size = 0x1000, scoped, tag = 'output window, operand 1']
    #allocation19 [shape = 's32[2]{0}', space=sflag, size = 0x8, scoped, tag = 'scoped memory for ast_forward.6']
    %15 = vsyncpa [#allocation4], 0
    %s16 = scalar_lea.sflag [#allocation4], 1
    %17 = vsyncpa %s16, 0
    %18 = vsyncpa [#allocation7], 0
    %s19 = scalar_lea.sflag [#allocation7], 1
    %20 = vsyncpa %s19, 0
    %21 = vsyncpa [#allocation10], 0
    %s22 = scalar_lea.sflag [#allocation10], 1
    %23 = vsyncpa %s22, 0
    %24 = vsyncpa [#allocation13], 0
    %25 = vsyncpa [#allocation16], 0
    %26 = vsyncpa [#allocation5], 0
    %s27 = scalar_lea.sflag [#allocation5], 1
    %28 = vsyncpa %s27, 0
    %29 = vsyncpa [#allocation19], 0
    %s30 = scalar_lea.sflag [#allocation19], 1
    %31 = vsyncpa %s30, 0
    loop: start=0, step=1, limit=10
    $region2: #{ast_forward.6} parent=1 // loop_pre_header
      _
    $region3: #{ast_forward.6} parent=1 // loop_header
      %s33 = sphi 0, %s37
      %p34 = scmp.ge.s32.totalorder %s33, 10
      %s40 = sphi 0, %s52
      %s41 = sphi 0, %s48
      %s42 = sphi 0, %s40
      %s43 = sphi 0, %s41
      %s44 = sphi 0, %s42
      %s45 = sphi 0, %s43
      %s55 = sphi 0, %s57
      %s58 = sphi 0, %s55
      %s59 = sphi 0, %s58
      %s75 = sphi 0, %s59
      %s81 = sphi 0, %s83
      %s84 = sphi 0, %s81
      %s85 = sphi 0, %s84
      %s101 = sphi 0, %s85
      %s107 = sphi 0, %s109
      %s110 = sphi 0, %s107
      %s111 = sphi 0, %s110
      %s127 = sphi 0, %s111
      %s133 = sphi 0, %s135
      %s136 = sphi 0, %s133
      %s137 = sphi 0, %s136
      %s153 = sphi 0, %s137
      %s159 = sphi 0, %s161
      %s162 = sphi 0, %s159
      %s163 = sphi 0, %s162
      %s179 = sphi 0, %s163
      %s183 = sphi 0, %s183
      %s185 = sphi 0, %s183
      %s186 = sphi 0, %s185
      %s200 = sphi 0, %s186
      %s204 = sphi 0, %s204
      %s206 = sphi 0, %s204
      %s207 = sphi 0, %s206
      %s221 = sphi 0, %s207
      %s225 = sphi 0, %s225
      %s227 = sphi 0, %s225
      %s228 = sphi 0, %s227
      %s242 = sphi 0, %s228
      %s248 = sphi 0, %s250
      %s251 = sphi 0, %s248
      %s252 = sphi 0, %s251
      %s268 = sphi 0, %s252
      %s274 = sphi 0, %s276
      %s277 = sphi 0, %s274
      %s278 = sphi 0, %s277
      %s294 = sphi 0, %s278
    $region4: #{ast_forward.6} parent=1 // loop_header_branch
      %36 = sbr.rel (%p34) target = $region8
    $region5: #{ast_forward.6} parent=1 // loop_body
      %s38 = ssub.s32 %s33, 1
      %s39 = ssub.s32 %s33, 2
      %s46 = sadd.s32 1, %s41
      %p47 = scmp.ge.s32.totalorder %s46, 4
      %s48 = scalar_select %p47, 0, %s46
      %s49 = sadd.s32 1, %s40
      %s50 = scalar_select %p47, %s49, %s40
      %p51 = scmp.ge.s32.totalorder %s50, 2
      %s52 = scalar_select %p51, 0, %s50
      %s53 = ssub.s32 %s40, %s52
      %p54 = scmp.eq.s32.totalorder %s53, 0
      %s56 = sadd.s32 %s55, 1
      %s57 = scalar_select %p54, %s55, %s56
      %p60 = pneg %p54
      %p61 = scmp.eq.s32.totalorder %s33, 7
      %p62 = por %p60, %p61
      %p63 = scmp.ne.s32.totalorder %s55, %s58
      %p64 = scmp.eq.s32.totalorder %s33, 0
      %p65 = por %p63, %p64
      %p66 = scmp.ne.s32.totalorder %s55, %s58
      %p67 = scmp.eq.s32.totalorder %s38, 7
      %p68 = por %p66, %p67
      %p69 = scmp.ne.s32.totalorder %s58, %s59
      %p70 = scmp.eq.s32.totalorder %s38, 0
      %p71 = por %p69, %p70
      %p72 = scmp.ne.s32.totalorder %s58, %s59
      %p73 = scmp.eq.s32.totalorder %s39, 7
      %p74 = por %p72, %p73
      %p76 = scmp.ne.s32.totalorder %s59, %s75
      %p77 = scmp.eq.s32.totalorder %s39, 0
      %p78 = por %p76, %p77
      %s79 = ssub.s32 %s40, %s52
      %p80 = scmp.eq.s32.totalorder %s79, 0
      %s82 = sadd.s32 %s81, 1
      %s83 = scalar_select %p80, %s81, %s82
      %p86 = pneg %p80
      %p87 = scmp.eq.s32.totalorder %s33, 7
      %p88 = por %p86, %p87
      %p89 = scmp.ne.s32.totalorder %s81, %s84
      %p90 = scmp.eq.s32.totalorder %s33, 0
      %p91 = por %p89, %p90
      %p92 = scmp.ne.s32.totalorder %s81, %s84
      %p93 = scmp.eq.s32.totalorder %s38, 7
      %p94 = por %p92, %p93
      %p95 = scmp.ne.s32.totalorder %s84, %s85
      %p96 = scmp.eq.s32.totalorder %s38, 0
      %p97 = por %p95, %p96
      %p98 = scmp.ne.s32.totalorder %s84, %s85
      %p99 = scmp.eq.s32.totalorder %s39, 7
      %p100 = por %p98, %p99
      %p102 = scmp.ne.s32.totalorder %s85, %s101
      %p103 = scmp.eq.s32.totalorder %s39, 0
      %p104 = por %p102, %p103
      %s105 = ssub.s32 %s41, %s48
      %p106 = scmp.eq.s32.totalorder %s105, 0
      %s108 = sadd.s32 %s107, 1
      %s109 = scalar_select %p106, %s107, %s108
      %p112 = pneg %p106
      %p113 = scmp.eq.s32.totalorder %s33, 7
      %p114 = por %p112, %p113
      %p115 = scmp.ne.s32.totalorder %s107, %s110
      %p116 = scmp.eq.s32.totalorder %s33, 0
      %p117 = por %p115, %p116
      %p118 = scmp.ne.s32.totalorder %s107, %s110
      %p119 = scmp.eq.s32.totalorder %s38, 7
      %p120 = por %p118, %p119
      %p121 = scmp.ne.s32.totalorder %s110, %s111
      %p122 = scmp.eq.s32.totalorder %s38, 0
      %p123 = por %p121, %p122
      %p124 = scmp.ne.s32.totalorder %s110, %s111
      %p125 = scmp.eq.s32.totalorder %s39, 7
      %p126 = por %p124, %p125
      %p128 = scmp.ne.s32.totalorder %s111, %s127
      %p129 = scmp.eq.s32.totalorder %s39, 0
      %p130 = por %p128, %p129
      %s131 = ssub.s32 %s41, %s48
      %p132 = scmp.eq.s32.totalorder %s131, 0
      %s134 = sadd.s32 %s133, 1
      %s135 = scalar_select %p132, %s133, %s134
      %p138 = pneg %p132
      %p139 = scmp.eq.s32.totalorder %s33, 7
      %p140 = por %p138, %p139
      %p141 = scmp.ne.s32.totalorder %s133, %s136
      %p142 = scmp.eq.s32.totalorder %s33, 0
      %p143 = por %p141, %p142
      %p144 = scmp.ne.s32.totalorder %s133, %s136
      %p145 = scmp.eq.s32.totalorder %s38, 7
      %p146 = por %p144, %p145
      %p147 = scmp.ne.s32.totalorder %s136, %s137
      %p148 = scmp.eq.s32.totalorder %s38, 0
      %p149 = por %p147, %p148
      %p150 = scmp.ne.s32.totalorder %s136, %s137
      %p151 = scmp.eq.s32.totalorder %s39, 7
      %p152 = por %p150, %p151
      %p154 = scmp.ne.s32.totalorder %s137, %s153
      %p155 = scmp.eq.s32.totalorder %s39, 0
      %p156 = por %p154, %p155
      %s157 = ssub.s32 %s41, %s48
      %p158 = scmp.eq.s32.totalorder %s157, 0
      %s160 = sadd.s32 %s159, 1
      %s161 = scalar_select %p158, %s159, %s160
      %p164 = pneg %p158
      %p165 = scmp.eq.s32.totalorder %s33, 7
      %p166 = por %p164, %p165
      %p167 = scmp.ne.s32.totalorder %s159, %s162
      %p168 = scmp.eq.s32.totalorder %s33, 0
      %p169 = por %p167, %p168
      %p170 = scmp.ne.s32.totalorder %s159, %s162
      %p171 = scmp.eq.s32.totalorder %s38, 7
      %p172 = por %p170, %p171
      %p173 = scmp.ne.s32.totalorder %s162, %s163
      %p174 = scmp.eq.s32.totalorder %s38, 0
      %p175 = por %p173, %p174
      %p176 = scmp.ne.s32.totalorder %s162, %s163
      %p177 = scmp.eq.s32.totalorder %s39, 7
      %p178 = por %p176, %p177
      %p180 = scmp.ne.s32.totalorder %s163, %s179
      %p181 = scmp.eq.s32.totalorder %s39, 0
      %p182 = por %p180, %p181
      %s184 = sadd.s32 %s183, 1
      %p187 = scmp.eq.s32.totalorder %s33, 7
      %p188 = scmp.ne.s32.totalorder %s183, %s185
      %p189 = scmp.eq.s32.totalorder %s33, 0
      %p190 = por %p188, %p189
      %p191 = scmp.ne.s32.totalorder %s183, %s185
      %p192 = scmp.eq.s32.totalorder %s38, 7
      %p193 = por %p191, %p192
      %p194 = scmp.ne.s32.totalorder %s185, %s186
      %p195 = scmp.eq.s32.totalorder %s38, 0
      %p196 = por %p194, %p195
      %p197 = scmp.ne.s32.totalorder %s185, %s186
      %p198 = scmp.eq.s32.totalorder %s39, 7
      %p199 = por %p197, %p198
      %p201 = scmp.ne.s32.totalorder %s186, %s200
      %p202 = scmp.eq.s32.totalorder %s39, 0
      %p203 = por %p201, %p202
      %s205 = sadd.s32 %s204, 1
      %p208 = scmp.eq.s32.totalorder %s33, 7
      %p209 = scmp.ne.s32.totalorder %s204, %s206
      %p210 = scmp.eq.s32.totalorder %s33, 0
      %p211 = por %p209, %p210
      %p212 = scmp.ne.s32.totalorder %s204, %s206
      %p213 = scmp.eq.s32.totalorder %s38, 7
      %p214 = por %p212, %p213
      %p215 = scmp.ne.s32.totalorder %s206, %s207
      %p216 = scmp.eq.s32.totalorder %s38, 0
      %p217 = por %p215, %p216
      %p218 = scmp.ne.s32.totalorder %s206, %s207
      %p219 = scmp.eq.s32.totalorder %s39, 7
      %p220 = por %p218, %p219
      %p222 = scmp.ne.s32.totalorder %s207, %s221
      %p223 = scmp.eq.s32.totalorder %s39, 0
      %p224 = por %p222, %p223
      %s226 = sadd.s32 %s225, 1
      %p229 = scmp.eq.s32.totalorder %s33, 7
      %p230 = scmp.ne.s32.totalorder %s225, %s227
      %p231 = scmp.eq.s32.totalorder %s33, 0
      %p232 = por %p230, %p231
      %p233 = scmp.ne.s32.totalorder %s225, %s227
      %p234 = scmp.eq.s32.totalorder %s38, 7
      %p235 = por %p233, %p234
      %p236 = scmp.ne.s32.totalorder %s227, %s228
      %p237 = scmp.eq.s32.totalorder %s38, 0
      %p238 = por %p236, %p237
      %p239 = scmp.ne.s32.totalorder %s227, %s228
      %p240 = scmp.eq.s32.totalorder %s39, 7
      %p241 = por %p239, %p240
      %p243 = scmp.ne.s32.totalorder %s228, %s242
      %p244 = scmp.eq.s32.totalorder %s39, 0
      %p245 = por %p243, %p244
      %s246 = ssub.s32 %s40, %s52
      %p247 = scmp.eq.s32.totalorder %s246, 0
      %s249 = sadd.s32 %s248, 1
      %s250 = scalar_select %p247, %s248, %s249
      %p253 = pneg %p247
      %p254 = scmp.eq.s32.totalorder %s33, 7
      %p255 = por %p253, %p254
      %p256 = scmp.ne.s32.totalorder %s248, %s251
      %p257 = scmp.eq.s32.totalorder %s33, 0
      %p258 = por %p256, %p257
      %p259 = scmp.ne.s32.totalorder %s248, %s251
      %p260 = scmp.eq.s32.totalorder %s38, 7
      %p261 = por %p259, %p260
      %p262 = scmp.ne.s32.totalorder %s251, %s252
      %p263 = scmp.eq.s32.totalorder %s38, 0
      %p264 = por %p262, %p263
      %p265 = scmp.ne.s32.totalorder %s251, %s252
      %p266 = scmp.eq.s32.totalorder %s39, 7
      %p267 = por %p265, %p266
      %p269 = scmp.ne.s32.totalorder %s252, %s268
      %p270 = scmp.eq.s32.totalorder %s39, 0
      %p271 = por %p269, %p270
      %s272 = ssub.s32 %s40, %s52
      %p273 = scmp.eq.s32.totalorder %s272, 0
      %s275 = sadd.s32 %s274, 1
      %s276 = scalar_select %p273, %s274, %s275
      %p279 = pneg %p273
      %p280 = scmp.eq.s32.totalorder %s33, 7
      %p281 = por %p279, %p280
      %p282 = scmp.ne.s32.totalorder %s274, %s277
      %p283 = scmp.eq.s32.totalorder %s33, 0
      %p284 = por %p282, %p283
      %p285 = scmp.ne.s32.totalorder %s274, %s277
      %p286 = scmp.eq.s32.totalorder %s38, 7
      %p287 = por %p285, %p286
      %p288 = scmp.ne.s32.totalorder %s277, %s278
      %p289 = scmp.eq.s32.totalorder %s38, 0
      %p290 = por %p288, %p289
      %p291 = scmp.ne.s32.totalorder %s277, %s278
      %p292 = scmp.eq.s32.totalorder %s39, 7
      %p293 = por %p291, %p292
      %p295 = scmp.ne.s32.totalorder %s278, %s294
      %p296 = scmp.eq.s32.totalorder %s39, 0
      %p297 = por %p295, %p296
      %p298 = scmp.le.s32.totalorder 1, %s33
      %p299 = scmp.lt.s32.totalorder %s33, 9
      %p300 = pnand %p298, %p299
      %p301 = pneg %p300
      // Predicated region
      $region9: #{ast_forward.6} parent=5 // pred_check
        _
      $region10: #{ast_forward.6} parent=5 // pred_check_branch
        %303 = sbr.rel (%p300) target = $region12
      $region11: #{ast_forward.6} parent=5 // pred_region
        %s304 = ssub.s32 %s33, 1
        // Predicated region
        $region13: #{ast_forward.6} parent=11 // pred_check
          %p305 = pneg %p196
        $region14: #{ast_forward.6} parent=11 // pred_check_branch
          %307 = sbr.rel (%p305) target = $region16
        $region15: #{ast_forward.6} parent=11 // pred_region
          %s309 = ssub.s32 16, 16
          %310 = vsyncadd [#allocation13], %s309
          %s312 = sshll.u32 [#allocation12], 4
          %s313 = int_to_ptr.vmem [resolvable:$true] %s312
          %315 = dma.hbm_to_vmem [thread:$0]  %s5, 16, %s313, [#allocation13]
        $region16: #{ast_forward.6} parent=11 // pred_fallthru
          _
        // Predicated region
        $region17: #{ast_forward.6} parent=11 // pred_check
          %p316 = pneg %p217
        $region18: #{ast_forward.6} parent=11 // pred_check_branch
          %318 = sbr.rel (%p316) target = $region20
        $region19: #{ast_forward.6} parent=11 // pred_region
          %s320 = ssub.s32 16, 16
          %321 = vsyncadd [#allocation13], %s320
          %s323 = sshll.u32 [#allocation14], 4
          %s324 = int_to_ptr.vmem [resolvable:$true] %s323
          %326 = dma.hbm_to_vmem [thread:$0]  %s6, 16, %s324, [#allocation13]
        $region20: #{ast_forward.6} parent=11 // pred_fallthru
          _
        // Predicated region
        $region21: #{ast_forward.6} parent=11 // pred_check
          %p327 = pneg %p238
        $region22: #{ast_forward.6} parent=11 // pred_check_branch
          %329 = sbr.rel (%p327) target = $region24
        $region23: #{ast_forward.6} parent=11 // pred_region
          %s331 = ssub.s32 16, 16
          %332 = vsyncadd [#allocation16], %s331
          %s334 = sshll.u32 [#allocation15], 4
          %s335 = int_to_ptr.vmem [resolvable:$true] %s334
          %337 = dma.hbm_to_vmem [thread:$0]  %s7, 16, %s335, [#allocation16]
        $region24: #{ast_forward.6} parent=11 // pred_fallthru
          _
      $region12: #{ast_forward.6} parent=5 // pred_fallthru
        _
      %p338 = scmp.lt.s32.totalorder %s33, 8
      // Predicated region
      $region25: #{ast_forward.6} parent=5 // pred_check
        %p339 = pneg %p338
      $region26: #{ast_forward.6} parent=5 // pred_check_branch
        %341 = sbr.rel (%p339) target = $region28
      $region27: #{ast_forward.6} parent=5 // pred_region
        // Predicated region
        $region29: #{ast_forward.6} parent=27 // pred_check
          %p342 = pneg %p65
        $region30: #{ast_forward.6} parent=27 // pred_check_branch
          %344 = sbr.rel (%p342) target = $region32
        $region31: #{ast_forward.6} parent=27 // pred_region
          %s345 = sand.u32 %s55, 1
          %s346 = scalar_lea.sflag [#allocation4], %s345
          %s347 = sand.u32 %s55, 1
          %s348 = smul.addr %s347, 4
          %s349 = scalar_lea.vmem [#allocation3], %s348
          %s351 = ssub.s32 64, 64
          %352 = vsyncadd %s346, %s351
          %s353 = smul.addr %s40, 64
          %s354 = scalar_lea.hbm %s0, %s353
          %s356 = sshll.u32 %s349, 4
          %s357 = int_to_ptr.vmem [resolvable:$true] %s356
          %359 = dma.hbm_to_vmem [thread:$0]  %s354, 64, %s357, %s346
        $region32: #{ast_forward.6} parent=27 // pred_fallthru
          _
        // Predicated region
        $region33: #{ast_forward.6} parent=27 // pred_check
          %p360 = pneg %p91
        $region34: #{ast_forward.6} parent=27 // pred_check_branch
          %362 = sbr.rel (%p360) target = $region36
        $region35: #{ast_forward.6} parent=27 // pred_region
          %s363 = sand.u32 %s33, 1
          %s364 = scalar_lea.sflag [#allocation7], %s363
          %s365 = sand.u32 %s81, 1
          %s366 = smul.addr %s365, 8
          %s367 = scalar_lea.vmem [#allocation6], %s366
          %s369 = ssub.s32 128, 128
          %370 = vsyncadd %s364, %s369
          %s371 = smul.addr %s40, 128
          %s372 = scalar_lea.hbm %s1, %s371
          %s374 = sshll.u32 %s367, 4
          %s375 = int_to_ptr.vmem [resolvable:$true] %s374
          %377 = dma.hbm_to_vmem [thread:$0]  %s372, 128, %s375, %s364
        $region36: #{ast_forward.6} parent=27 // pred_fallthru
          _
        // Predicated region
        $region37: #{ast_forward.6} parent=27 // pred_check
          %p378 = pneg %p117
        $region38: #{ast_forward.6} parent=27 // pred_check_branch
          %380 = sbr.rel (%p378) target = $region40
        $region39: #{ast_forward.6} parent=27 // pred_region
          %s381 = sand.u32 %s33, 1
          %s382 = scalar_lea.sflag [#allocation7], %s381
          %s383 = sand.u32 %s107, 1
          %s384 = smul.addr %s383, 64
          %s385 = scalar_lea.vmem [#allocation8], %s384
          %s387 = ssub.s32 1024, 1024
          %388 = vsyncadd %s382, %s387
          %s389 = smul.addr %s41, 16
          %s390 = smul.addr %s389, 64
          %s391 = scalar_lea.hbm %s2, %s390
          %s392 = sshll.u32 %s385, 4
          %s393 = int_to_ptr.vmem [resolvable:$true] %s392
          %398 = dma.hbm_to_vmem [thread:$0]  %s391, 1024, %s393, %s382, 64, 64, 4
        $region40: #{ast_forward.6} parent=27 // pred_fallthru
          _
        // Predicated region
        $region41: #{ast_forward.6} parent=27 // pred_check
          %p399 = pneg %p143
        $region42: #{ast_forward.6} parent=27 // pred_check_branch
          %401 = sbr.rel (%p399) target = $region44
        $region43: #{ast_forward.6} parent=27 // pred_region
          %s402 = sand.u32 %s33, 1
          %s403 = scalar_lea.sflag [#allocation10], %s402
          %s404 = sand.u32 %s133, 1
          %s405 = scalar_lea.vmem [#allocation9], %s404
          %s407 = ssub.s32 16, 16
          %408 = vsyncadd %s403, %s407
          %s409 = smul.addr %s41, 16
          %s410 = scalar_lea.hbm %s3, %s409
          %s412 = sshll.u32 %s405, 4
          %s413 = int_to_ptr.vmem [resolvable:$true] %s412
          %415 = dma.hbm_to_vmem [thread:$0]  %s410, 16, %s413, %s403
        $region44: #{ast_forward.6} parent=27 // pred_fallthru
          _
        // Predicated region
        $region45: #{ast_forward.6} parent=27 // pred_check
          %p416 = pneg %p169
        $region46: #{ast_forward.6} parent=27 // pred_check_branch
          %418 = sbr.rel (%p416) target = $region48
        $region47: #{ast_forward.6} parent=27 // pred_region
          %s419 = sand.u32 %s33, 1
          %s420 = scalar_lea.sflag [#allocation10], %s419
          %s421 = sand.u32 %s159, 1
          %s422 = smul.addr %s421, 16
          %s423 = scalar_lea.vmem [#allocation11], %s422
          %s425 = ssub.s32 256, 256
          %426 = vsyncadd %s420, %s425
          %s427 = smul.addr %s41, 4
          %s428 = smul.addr %s427, 64
          %s429 = scalar_lea.hbm %s4, %s428
          %s430 = sshll.u32 %s423, 4
          %s431 = int_to_ptr.vmem [resolvable:$true] %s430
          %436 = dma.hbm_to_vmem [thread:$0]  %s429, 256, %s431, %s420, 64, 64, 4
        $region48: #{ast_forward.6} parent=27 // pred_fallthru
          _
      $region28: #{ast_forward.6} parent=5 // pred_fallthru
        _
      %p437 = scmp.le.s32.totalorder 1, %s33
      %p438 = scmp.lt.s32.totalorder %s33, 9
      %p439 = pnand %p437, %p438
      %p440 = pneg %p439
      // Predicated region
      $region49: #{ast_forward.6} parent=5 // pred_check
        _
      $region50: #{ast_forward.6} parent=5 // pred_check_branch
        %442 = sbr.rel (%p439) target = $region52
      $region51: #{ast_forward.6} parent=5 // pred_region
        %s443 = ssub.s32 %s33, 1
        %s444 = sand.u32 %s58, 1
        %s445 = scalar_lea.sflag [#allocation4], %s444
        %s446 = sand.u32 %s58, 1
        %s447 = smul.addr %s446, 4
        %s448 = scalar_lea.vmem [#allocation3], %s447
        // Predicated region
        $region53: #{ast_forward.6} parent=51 // pred_check
          %p449 = pneg %p71
        $region54: #{ast_forward.6} parent=51 // pred_check_branch
          %451 = sbr.rel (%p449) target = $region56
        $region55: #{ast_forward.6} parent=51 // pred_region
          %452 = dma.done %s445, 64
        $region56: #{ast_forward.6} parent=51 // pred_fallthru
          _
        %s453 = sand.u32 %s38, 1
        %s454 = scalar_lea.sflag [#allocation7], %s453
        %s455 = sand.u32 %s84, 1
        %s456 = smul.addr %s455, 8
        %s457 = scalar_lea.vmem [#allocation6], %s456
        // Predicated region
        $region57: #{ast_forward.6} parent=51 // pred_check
          %p458 = pneg %p97
        $region58: #{ast_forward.6} parent=51 // pred_check_branch
          %460 = sbr.rel (%p458) target = $region60
        $region59: #{ast_forward.6} parent=51 // pred_region
          %461 = dma.done %s454, 128
        $region60: #{ast_forward.6} parent=51 // pred_fallthru
          _
        %s462 = sand.u32 %s38, 1
        %s463 = scalar_lea.sflag [#allocation7], %s462
        %s464 = sand.u32 %s110, 1
        %s465 = smul.addr %s464, 64
        %s466 = scalar_lea.vmem [#allocation8], %s465
        // Predicated region
        $region61: #{ast_forward.6} parent=51 // pred_check
          %p467 = pneg %p123
        $region62: #{ast_forward.6} parent=51 // pred_check_branch
          %469 = sbr.rel (%p467) target = $region64
        $region63: #{ast_forward.6} parent=51 // pred_region
          %470 = dma.done %s463, 1024
        $region64: #{ast_forward.6} parent=51 // pred_fallthru
          _
        %s471 = sand.u32 %s38, 1
        %s472 = scalar_lea.sflag [#allocation10], %s471
        %s473 = sand.u32 %s136, 1
        %s474 = scalar_lea.vmem [#allocation9], %s473
        // Predicated region
        $region65: #{ast_forward.6} parent=51 // pred_check
          %p475 = pneg %p149
        $region66: #{ast_forward.6} parent=51 // pred_check_branch
          %477 = sbr.rel (%p475) target = $region68
        $region67: #{ast_forward.6} parent=51 // pred_region
          %478 = dma.done %s472, 16
        $region68: #{ast_forward.6} parent=51 // pred_fallthru
          _
        %s479 = sand.u32 %s38, 1
        %s480 = scalar_lea.sflag [#allocation10], %s479
        %s481 = sand.u32 %s162, 1
        %s482 = smul.addr %s481, 16
        %s483 = scalar_lea.vmem [#allocation11], %s482
        // Predicated region
        $region69: #{ast_forward.6} parent=51 // pred_check
          %p484 = pneg %p175
        $region70: #{ast_forward.6} parent=51 // pred_check_branch
          %486 = sbr.rel (%p484) target = $region72
        $region71: #{ast_forward.6} parent=51 // pred_region
          %487 = dma.done %s480, 256
        $region72: #{ast_forward.6} parent=51 // pred_fallthru
          _
        // Predicated region
        $region73: #{ast_forward.6} parent=51 // pred_check
          %p488 = pneg %p196
        $region74: #{ast_forward.6} parent=51 // pred_check_branch
          %490 = sbr.rel (%p488) target = $region76
        $region75: #{ast_forward.6} parent=51 // pred_region
          %491 = dma.done [#allocation13], 16
        $region76: #{ast_forward.6} parent=51 // pred_fallthru
          _
        // Predicated region
        $region77: #{ast_forward.6} parent=51 // pred_check
          %p492 = pneg %p217
        $region78: #{ast_forward.6} parent=51 // pred_check_branch
          %494 = sbr.rel (%p492) target = $region80
        $region79: #{ast_forward.6} parent=51 // pred_region
          %495 = dma.done [#allocation13], 16
        $region80: #{ast_forward.6} parent=51 // pred_fallthru
          _
        // Predicated region
        $region81: #{ast_forward.6} parent=51 // pred_check
          %p496 = pneg %p238
        $region82: #{ast_forward.6} parent=51 // pred_check_branch
          %498 = sbr.rel (%p496) target = $region84
        $region83: #{ast_forward.6} parent=51 // pred_region
          %499 = dma.done [#allocation16], 16
        $region84: #{ast_forward.6} parent=51 // pred_fallthru
          _
        %s500 = sand.u32 %s58, 1
        %s501 = scalar_lea.sflag [#allocation4], %s500
        %s502 = sand.u32 %s58, 1
        %s503 = smul.addr %s502, 4
        %s504 = scalar_lea.vmem [#allocation3], %s503
        %p505 = pneg %p71
        %p506 = pneg %p68
        %s507 = sand.u32 %s38, 1
        %s508 = scalar_lea.sflag [#allocation7], %s507
        %s509 = sand.u32 %s84, 1
        %s510 = smul.addr %s509, 8
        %s511 = scalar_lea.vmem [#allocation6], %s510
        %p512 = pneg %p97
        %p513 = pneg %p94
        %s514 = sand.u32 %s38, 1
        %s515 = scalar_lea.sflag [#allocation7], %s514
        %s516 = sand.u32 %s110, 1
        %s517 = smul.addr %s516, 64
        %s518 = scalar_lea.vmem [#allocation8], %s517
        %p519 = pneg %p123
        %p520 = pneg %p120
        %s521 = sand.u32 %s38, 1
        %s522 = scalar_lea.sflag [#allocation10], %s521
        %s523 = sand.u32 %s136, 1
        %s524 = scalar_lea.vmem [#allocation9], %s523
        %p525 = pneg %p149
        %p526 = pneg %p146
        %s527 = sand.u32 %s38, 1
        %s528 = scalar_lea.sflag [#allocation10], %s527
        %s529 = sand.u32 %s162, 1
        %s530 = smul.addr %s529, 16
        %s531 = scalar_lea.vmem [#allocation11], %s530
        %p532 = pneg %p175
        %p533 = pneg %p172
        %p534 = pneg %p196
        %p535 = pneg %p193
        %p536 = pneg %p217
        %p537 = pneg %p214
        %p538 = pneg %p238
        %p539 = pneg %p235
        %p540 = pneg %p264
        %p541 = pneg %p261
        %s542 = sand.u32 %s251, 1
        %s543 = scalar_lea.sflag [#allocation5], %s542
        %s544 = sand.u32 %s251, 1
        %s545 = smul.addr %s544, 8
        %s546 = scalar_lea.vmem [#allocation17], %s545
        %p547 = pneg %p290
        %p548 = pneg %p287
        %s549 = sand.u32 %s277, 1
        %s550 = scalar_lea.sflag [#allocation19], %s549
        %s551 = sand.u32 %s277, 1
        %s552 = smul.addr %s551, 4
        %s553 = scalar_lea.vmem [#allocation18], %s552
        %p555 = scmp.eq.s32.totalorder %s43, 0
        // Predicated region
        $region85: #{ast_forward.6} parent=51 // pred_check
          %p556 = pneg %p555
        $region86: #{ast_forward.6} parent=51 // pred_check_branch
          %558 = sbr.rel (%p556) target = $region88
        $region87: #{ast_forward.6} parent=51 // pred_region
          %559 = vst [vmem:[#allocation2] sm:$0x1f] 0.0
        $region88: #{ast_forward.6} parent=51 // pred_fallthru
          _
        %v560 = vld [vmem:[%s448] sm:$0x7]
        %v561 = vld [vmem:[%s466] sm:$0xf]
        %v562 = vld [vmem:[%s466 + $0x4] sm:$0xf]
        %v563 = vld [vmem:[%s466 + $0x8] sm:$0xf]
        %v564 = vld [vmem:[%s466 + $0xc] sm:$0xf]
        %v565 = vld [vmem:[%s466 + $0x10] sm:$0xf]
        %v566 = vld [vmem:[%s466 + $0x14] sm:$0xf]
        %v567 = vld [vmem:[%s466 + $0x18] sm:$0xf]
        %v568 = vld [vmem:[%s466 + $0x1c] sm:$0xf]
        %v569 = vld [vmem:[%s466 + $0x20] sm:$0xf]
        %v570 = vld [vmem:[%s466 + $0x24] sm:$0xf]
        %v571 = vld [vmem:[%s466 + $0x28] sm:$0xf]
        %v572 = vld [vmem:[%s466 + $0x2c] sm:$0xf]
        %v573 = vld [vmem:[%s466 + $0x30] sm:$0xf]
        %v574 = vld [vmem:[%s466 + $0x34] sm:$0xf]
        %v575 = vld [vmem:[%s466 + $0x38] sm:$0xf]
        %v576 = vld [vmem:[%s466 + $0x3c] sm:$0xf]
        %v577 = vld [vmem:[%s474] sm:$0x1]
        %v579 = vlaneseq
        %v580 = vshrl.u32 %v579, 7
        %v581 = vsub.s32 0, %v580
        %v582 = vrot.slane %v577, %v581
        %v600 = vunpack.c.l.b16 %v561
        %v601 = vunpack.c.l.b16 %v562
        %v602 = vunpack.c.l.b16 %v563
        %v603 = vunpack.c.l.b16 %v564
        %v604 = vunpack.c.l.b16 %v565
        %v605 = vunpack.c.l.b16 %v566
        %v606 = vunpack.c.l.b16 %v567
        %v607 = vunpack.c.l.b16 %v568
        %v608 = vunpack.c.l.b16 %v569
        %v609 = vunpack.c.l.b16 %v570
        %v610 = vunpack.c.l.b16 %v571
        %v611 = vunpack.c.l.b16 %v572
        %v612 = vunpack.c.l.b16 %v573
        %v613 = vunpack.c.l.b16 %v574
        %v614 = vunpack.c.l.b16 %v575
        %v615 = vunpack.c.l.b16 %v576
        %v616 = vpack.c.b16 %v601, %v600
        %v617 = vpack.c.b16 %v603, %v602
        %v618 = vpack.c.b16 %v605, %v604
        %v619 = vpack.c.b16 %v607, %v606
        %v620 = vpack.c.b16 %v609, %v608
        %v621 = vpack.c.b16 %v611, %v610
        %v622 = vpack.c.b16 %v613, %v612
        %v623 = vpack.c.b16 %v615, %v614
        %632 = vmatprep.subr.bf16.mxu0 0
        %633 = vmatpush1.bf16.msra.mxu0 %v616
        %634 = vmatprep.subr.bf16.mxu0 0
        %635 = vmatpush1.bf16.msra.mxu0 %v617
        %636 = vmatprep.subr.bf16.mxu0 0
        %637 = vmatpush1.bf16.msra.mxu0 %v618
        %638 = vmatprep.subr.bf16.mxu0 0
        %639 = vmatpush1.bf16.msra.mxu0 %v619
        %640 = vmatprep.subr.bf16.mxu0 0
        %641 = vmatpush1.bf16.msra.mxu0 %v620
        %642 = vmatprep.subr.bf16.mxu0 0
        %643 = vmatpush1.bf16.msra.mxu0 %v621
        %644 = vmatprep.subr.bf16.mxu0 0
        %645 = vmatpush1.bf16.msra.mxu0 %v622
        %646 = vmatprep.subr.bf16.mxu0 0
        %647 = vmatpush1.bf16.msra.mxu0 %v623
        %648 = vmatprep.subr.bf16.mxu0 0
        %649 = vmatpush1.bf16.msra.mxu0 0
        %650 = vmatprep.subr.bf16.mxu0 0
        %651 = vmatpush1.bf16.msra.mxu0 0
        %652 = vmatprep.subr.bf16.mxu0 0
        %653 = vmatpush1.bf16.msra.mxu0 0
        %654 = vmatprep.subr.bf16.mxu0 0
        %655 = vmatpush1.bf16.msra.mxu0 0
        %656 = vmatprep.subr.bf16.mxu0 0
        %657 = vmatpush1.bf16.msra.mxu0 0
        %658 = vmatprep.subr.bf16.mxu0 0
        %659 = vmatpush1.bf16.msra.mxu0 0
        %660 = vmatprep.subr.bf16.mxu0 0
        %661 = vmatpush1.bf16.msra.mxu0 0
        %662 = vmatprep.subr.bf16.mxu0 0
        %663 = vmatpush1.bf16.msra.mxu0 0
        %664 = vmatprep.mubr.bf16.mxu0 0
        %665 = vmatmul.mubr.bf16.gmra.mrb[0].mxu0 %v560
        %v666 = vpop.f32.mrb[0].mxu0
        %v667 = vadd.f32 %v582, %v666
        %v668 = vpop.f32.mrb[0].mxu0
        %v669 = vpop.f32.mrb[0].mxu0
        %v670 = vpop.f32.mrb[0].mxu0
        %671 = vdwg.mxu0
        %v672 = vpack.c.bf16 %v667, %v667
        %674 = vrot.lane.b32.xlu0 %v672, 96
        %v675 = vpop.permute.xlu0 %674
        %vm676 = vcmask 261120
        %v678 = vsel %vm676, %v672, 0
        %v681 = vsel %vm676, %v675, 0
        %683 = vmatprep.subr.bf16.mxu0 0
        %684 = vmatpush1.bf16.xpose.msra.mxu0 %v681
        %685 = vmatprep.subr.bf16.mxu0 0
        %686 = vmatpush1.bf16.xpose.msra.mxu0 0
        %687 = vmatprep.subr.bf16.mxu0 0
        %688 = vmatpush1.bf16.xpose.msra.mxu0 0
        %689 = vmatprep.subr.bf16.mxu0 0
        %690 = vmatpush1.bf16.xpose.msra.mxu0 0
        %691 = vmatprep.subr.bf16.mxu0 0
        %692 = vmatpush1.bf16.xpose.msra.mxu0 0
        %693 = vmatprep.subr.bf16.mxu0 0
        %694 = vmatpush1.bf16.xpose.msra.mxu0 0
        %695 = vmatprep.subr.bf16.mxu0 0
        %696 = vmatpush1.bf16.xpose.msra.mxu0 0
        %697 = vmatprep.subr.bf16.mxu0 0
        %698 = vmatpush1.bf16.xpose.msra.mxu0 0
        %699 = vmatprep.subr.bf16.mxu0 0
        %700 = vmatpush1.bf16.xpose.msra.mxu0 0
        %701 = vmatprep.subr.bf16.mxu0 0
        %702 = vmatpush1.bf16.xpose.msra.mxu0 0
        %703 = vmatprep.subr.bf16.mxu0 0
        %704 = vmatpush1.bf16.xpose.msra.mxu0 0
        %705 = vmatprep.subr.bf16.mxu0 0
        %706 = vmatpush1.bf16.xpose.msra.mxu0 0
        %707 = vmatprep.subr.bf16.mxu0 0
        %708 = vmatpush1.bf16.xpose.msra.mxu0 0
        %709 = vmatprep.subr.bf16.mxu0 0
        %710 = vmatpush1.bf16.xpose.msra.mxu0 0
        %711 = vmatprep.subr.bf16.mxu0 0
        %712 = vmatpush1.bf16.xpose.msra.mxu0 0
        %713 = vmatprep.subr.bf16.mxu0 0
        %714 = vmatpush1.bf16.xpose.msra.mxu0 0
        %715 = vmatprep.mubr.bf16.mxu0 0
        %716 = vmatmul.mubr.bf16.gmra.mrb[0].mxu0 %v678
        %v717 = vpop.f32.mrb[0].mxu0
        %v718 = vadd.f32 0.0, %v717
        %v719 = vpop.f32.mrb[0].mxu0
        %v720 = vpop.f32.mrb[0].mxu0
        %v721 = vpop.f32.mrb[0].mxu0
        %722 = vdwg.mxu0
        %vm723 = vcmask 36864
        %v724 = vsel %vm723, %v718, -inf
        %725 = vmax.xlane.f32.xlu0 %v724
        %v726 = vpop.xlane.xlu0 %725
        %v727 = vsub.f32 %v718, %v726
        %v728 = vmul.f32 %v727, 1.442695
        %v729 = vpow.pop %v728
        %v730 = vsel %vm723, %v729, 0.0
        %731 = vadd.xlane.f32.xlu0 %v730
        %v732 = vpop.xlane.xlu0 %731
        %v733 = vrcp.pop %v732
        %v734 = vmul.f32 %v729, %v733
        %v735 = vpack.c.bf16 %v734, %v734
        %736 = vrot.lane.b32.xlu0 %v672, 64
        %v737 = vpop.permute.xlu0 %736
        %vm738 = vcmask 39936
        %v740 = vsel %vm738, %v735, 0
        %vm742 = vcmask 1041408
        %vm743 = vcmask 1042432
        %v744 = vsel %vm742, 4294967295, 65535
        %v745 = vsel %vm743, %v744, 0
        %v747 = vand.u32 %v737, %v745
        %749 = vmatprep.subr.bf16.mxu0 0
        %750 = vmatpush1.bf16.msra.mxu0 %v747
        %751 = vmatprep.subr.bf16.mxu0 0
        %752 = vmatpush1.bf16.msra.mxu0 0
        %753 = vmatprep.subr.bf16.mxu0 0
        %754 = vmatpush1.bf16.msra.mxu0 0
        %755 = vmatprep.subr.bf16.mxu0 0
        %756 = vmatpush1.bf16.msra.mxu0 0
        %757 = vmatprep.subr.bf16.mxu0 0
        %758 = vmatpush1.bf16.msra.mxu0 0
        %759 = vmatprep.subr.bf16.mxu0 0
        %760 = vmatpush1.bf16.msra.mxu0 0
        %761 = vmatprep.subr.bf16.mxu0 0
        %762 = vmatpush1.bf16.msra.mxu0 0
        %763 = vmatprep.subr.bf16.mxu0 0
        %764 = vmatpush1.bf16.msra.mxu0 0
        %765 = vmatprep.subr.bf16.mxu0 0
        %766 = vmatpush1.bf16.msra.mxu0 0
        %767 = vmatprep.subr.bf16.mxu0 0
        %768 = vmatpush1.bf16.msra.mxu0 0
        %769 = vmatprep.subr.bf16.mxu0 0
        %770 = vmatpush1.bf16.msra.mxu0 0
        %771 = vmatprep.subr.bf16.mxu0 0
        %772 = vmatpush1.bf16.msra.mxu0 0
        %773 = vmatprep.subr.bf16.mxu0 0
        %774 = vmatpush1.bf16.msra.mxu0 0
        %775 = vmatprep.subr.bf16.mxu0 0
        %776 = vmatpush1.bf16.msra.mxu0 0
        %777 = vmatprep.subr.bf16.mxu0 0
        %778 = vmatpush1.bf16.msra.mxu0 0
        %779 = vmatprep.subr.bf16.mxu0 0
        %780 = vmatpush1.bf16.msra.mxu0 0
        %781 = vmatprep.mubr.bf16.mxu0 0
        %782 = vmatmul.mubr.bf16.gmra.mrb[0].mxu0 %v740
        %v783 = vpop.f32.mrb[0].mxu0
        %v784 = vadd.f32 0.0, %v783
        %v785 = vpop.f32.mrb[0].mxu0
        %v786 = vpop.f32.mrb[0].mxu0
        %v787 = vpop.f32.mrb[0].mxu0
        %788 = vdwg.mxu0
        %v789 = vld [vmem:[#allocation2] sm:$0x1f]
        %v790 = vpack.c.bf16 %v784, %v784
        %v791 = vld [vmem:[%s483] sm:$0xf]
        %v792 = vld [vmem:[%s483 + $0x4] sm:$0xf]
        %v793 = vld [vmem:[%s483 + $0x8] sm:$0xf]
        %v794 = vld [vmem:[%s483 + $0xc] sm:$0xf]
        %v799 = vunpack.c.l.b16 %v791
        %v800 = vunpack.c.l.b16 %v792
        %v801 = vunpack.c.l.b16 %v793
        %v802 = vunpack.c.l.b16 %v794
        %v803 = vpack.c.b16 %v800, %v799
        %v804 = vpack.c.b16 %v802, %v801
        %v808 = vsel %vm676, %v790, 0
        %810 = vmatprep.subr.bf16.mxu0 0
        %811 = vmatpush1.bf16.msra.mxu0 %v803
        %812 = vmatprep.subr.bf16.mxu0 0
        %813 = vmatpush1.bf16.msra.mxu0 %v804
        %814 = vmatprep.subr.bf16.mxu0 0
        %815 = vmatpush1.bf16.msra.mxu0 0
        %816 = vmatprep.subr.bf16.mxu0 0
        %817 = vmatpush1.bf16.msra.mxu0 0
        %818 = vmatprep.subr.bf16.mxu0 0
        %819 = vmatpush1.bf16.msra.mxu0 0
        %820 = vmatprep.subr.bf16.mxu0 0
        %821 = vmatpush1.bf16.msra.mxu0 0
        %822 = vmatprep.subr.bf16.mxu0 0
        %823 = vmatpush1.bf16.msra.mxu0 0
        %824 = vmatprep.subr.bf16.mxu0 0
        %825 = vmatpush1.bf16.msra.mxu0 0
        %826 = vmatprep.subr.bf16.mxu0 0
        %827 = vmatpush1.bf16.msra.mxu0 0
        %828 = vmatprep.subr.bf16.mxu0 0
        %829 = vmatpush1.bf16.msra.mxu0 0
        %830 = vmatprep.subr.bf16.mxu0 0
        %831 = vmatpush1.bf16.msra.mxu0 0
        %832 = vmatprep.subr.bf16.mxu0 0
        %833 = vmatpush1.bf16.msra.mxu0 0
        %834 = vmatprep.subr.bf16.mxu0 0
        %835 = vmatpush1.bf16.msra.mxu0 0
        %836 = vmatprep.subr.bf16.mxu0 0
        %837 = vmatpush1.bf16.msra.mxu0 0
        %838 = vmatprep.subr.bf16.mxu0 0
        %839 = vmatpush1.bf16.msra.mxu0 0
        %840 = vmatprep.subr.bf16.mxu0 0
        %841 = vmatpush1.bf16.msra.mxu0 0
        %842 = vmatprep.mubr.bf16.mxu0 0
        %843 = vmatmul.mubr.bf16.gmra.mrb[0].mxu0 %v808
        %v844 = vpop.f32.mrb[0].mxu0
        %v845 = vadd.f32 0.0, %v844
        %v846 = vpop.f32.mrb[0].mxu0
        %v847 = vpop.f32.mrb[0].mxu0
        %v848 = vpop.f32.mrb[0].mxu0
        %849 = vdwg.mxu0
        %v850 = vadd.f32 %v789, %v845
        %851 = vst [vmem:[#allocation2] sm:$0x1f] %v850
        %p852 = scmp.eq.s32.totalorder %s43, 3
        // Predicated region
        $region89: #{ast_forward.6} parent=51 // pred_check
          %p853 = pneg %p852
        $region90: #{ast_forward.6} parent=51 // pred_check_branch
          %855 = sbr.rel (%p853) target = $region92
        $region91: #{ast_forward.6} parent=51 // pred_region
          %v856 = vld [vmem:[#allocation2] sm:$0x1f]
          %v857 = vld [vmem:[#allocation12] sm:$0x1]
          %v859 = vlaneseq
          %v860 = vshrl.u32 %v859, 7
          %v861 = vsub.s32 0, %v860
          %v862 = vrot.slane %v857, %v861
          %v864 = vadd.f32 %v856, %v862
          %v865 = vld [vmem:[%s457] sm:$0x1f]
          %v866 = vadd.f32 %v864, %v865
          %vm867 = vcmask 1044480
          %v868 = vsel %vm867, %v866, 0.0
          %869 = vadd.xlane.f32.xlu0 %v868
          %v870 = vpop.xlane.xlu0 %869
          %v871 = vrcp.pop 128.0
          %v872 = vmul.f32 %v870, %v871
          %v873 = vsub.f32 %v866, %v872
          %v874 = vmul.f32 %v873, %v873
          %v875 = vsel %vm867, %v874, 0.0
          %876 = vadd.xlane.f32.xlu0 %v875
          %v877 = vpop.xlane.xlu0 %876
          %v878 = vmul.f32 %v877, %v871
          %v879 = vadd.f32 %v878, 1e-05
          %v880 = vrsqrt.pop %v879
          %v881 = vmul.f32 %v873, %v880
          %v882 = vld [vmem:[#allocation14] sm:$0x1]
          %v884 = vlaneseq
          %v885 = vshrl.u32 %v884, 7
          %v886 = vsub.s32 0, %v885
          %v887 = vrot.slane %v882, %v886
          %v889 = vmul.f32 %v881, %v887
          %v890 = vld [vmem:[#allocation15] sm:$0x1]
          %v892 = vlaneseq
          %v893 = vshrl.u32 %v892, 7
          %v894 = vsub.s32 0, %v893
          %v895 = vrot.slane %v890, %v894
          %v897 = vadd.f32 %v889, %v895
          %898 = vst [vmem:[%s546] sm:$0x1f] %v897
          %v899 = vpack.c.bf16 %v897, %v897
          %vm900 = vcmask 1042432
          %vm901 = vsmask.f32 2304
          %vm902 = vmand %vm900, %vm901
          %v903 = vld [vmem:[%s553] sm:$0x7]
          %v904 = vsel %vm902, %v899, %v903
          %905 = vst [vmem:[%s553] sm:$0x7] %v904
        $region92: #{ast_forward.6} parent=51 // pred_fallthru
          _
        %s906 = sand.u32 %s251, 1
        %s907 = scalar_lea.sflag [#allocation5], %s906
        %s908 = sand.u32 %s251, 1
        %s909 = smul.addr %s908, 8
        %s910 = scalar_lea.vmem [#allocation17], %s909
        %s911 = sand.u32 %s277, 1
        %s912 = scalar_lea.sflag [#allocation19], %s911
        %s913 = sand.u32 %s277, 1
        %s914 = smul.addr %s913, 4
        %s915 = scalar_lea.vmem [#allocation18], %s914
        // Predicated region
        $region93: #{ast_forward.6} parent=51 // pred_check
          %p916 = pneg %p261
        $region94: #{ast_forward.6} parent=51 // pred_check_branch
          %918 = sbr.rel (%p916) target = $region96
        $region95: #{ast_forward.6} parent=51 // pred_region
          %s920 = ssub.s32 128, 128
          %921 = vsyncadd %s907, %s920
          %s922 = smul.addr %s42, 128
          %s923 = scalar_lea.hbm %s8, %s922
          %s925 = sshll.u32 %s910, 4
          %s926 = int_to_ptr.vmem [resolvable:$true] %s925
          %928 = dma.vmem_to_hbm [thread:$0]  %s926, 128, %s923, %s907
        $region96: #{ast_forward.6} parent=51 // pred_fallthru
          _
        // Predicated region
        $region97: #{ast_forward.6} parent=51 // pred_check
          %p929 = pneg %p287
        $region98: #{ast_forward.6} parent=51 // pred_check_branch
          %931 = sbr.rel (%p929) target = $region100
        $region99: #{ast_forward.6} parent=51 // pred_region
          %s933 = ssub.s32 64, 64
          %934 = vsyncadd %s912, %s933
          %s935 = smul.addr %s42, 64
          %s936 = scalar_lea.hbm %s9, %s935
          %s938 = sshll.u32 %s915, 4
          %s939 = int_to_ptr.vmem [resolvable:$true] %s938
          %941 = dma.vmem_to_hbm [thread:$0]  %s939, 64, %s936, %s912
        $region100: #{ast_forward.6} parent=51 // pred_fallthru
          _
      $region52: #{ast_forward.6} parent=5 // pred_fallthru
        _
      %p942 = scmp.le.s32.totalorder 2, %s33
      // Predicated region
      $region101: #{ast_forward.6} parent=5 // pred_check
        %p943 = pneg %p942
      $region102: #{ast_forward.6} parent=5 // pred_check_branch
        %945 = sbr.rel (%p943) target = $region104
      $region103: #{ast_forward.6} parent=5 // pred_region
        %s946 = ssub.s32 %s33, 2
        // Predicated region
        $region105: #{ast_forward.6} parent=103 // pred_check
          %p947 = pneg %p267
        $region106: #{ast_forward.6} parent=103 // pred_check_branch
          %949 = sbr.rel (%p947) target = $region108
        $region107: #{ast_forward.6} parent=103 // pred_region
          %s950 = sand.u32 %s252, 1
          %s951 = scalar_lea.sflag [#allocation5], %s950
          %s952 = sand.u32 %s252, 1
          %s953 = smul.addr %s952, 8
          %s954 = scalar_lea.vmem [#allocation17], %s953
          %955 = dma.done %s951, 128
        $region108: #{ast_forward.6} parent=103 // pred_fallthru
          _
        // Predicated region
        $region109: #{ast_forward.6} parent=103 // pred_check
          %p956 = pneg %p293
        $region110: #{ast_forward.6} parent=103 // pred_check_branch
          %958 = sbr.rel (%p956) target = $region112
        $region111: #{ast_forward.6} parent=103 // pred_region
          %s959 = sand.u32 %s278, 1
          %s960 = scalar_lea.sflag [#allocation19], %s959
          %s961 = sand.u32 %s278, 1
          %s962 = smul.addr %s961, 4
          %s963 = scalar_lea.vmem [#allocation18], %s962
          %964 = dma.done %s960, 64
        $region112: #{ast_forward.6} parent=103 // pred_fallthru
          _
      $region104: #{ast_forward.6} parent=5 // pred_fallthru
        _
    $region6: #{ast_forward.6} parent=1 // loop_footer
      %s37 = sadd.s32 1, %s33
    $region7: #{ast_forward.6} parent=1 // loop_footer_branch
      %32 = sbr.rel target = $region3
    $region8: #{ast_forward.6} parent=1 // loop_exit
      _
    %965 = vsyncpa [#allocation4], 1
    %s966 = scalar_lea.sflag [#allocation4], 1
    %967 = vsyncpa %s966, 1
    %968 = vsyncpa [#allocation7], 1
    %s969 = scalar_lea.sflag [#allocation7], 1
    %970 = vsyncpa %s969, 1
    %971 = vsyncpa [#allocation10], 1
    %s972 = scalar_lea.sflag [#allocation10], 1
    %973 = vsyncpa %s972, 1
    %974 = vsyncpa [#allocation13], 1
    %975 = vsyncpa [#allocation16], 1
    %976 = vsyncpa [#allocation5], 1
    %s977 = scalar_lea.sflag [#allocation5], 1
    %978 = vsyncpa %s977, 1
    %979 = vsyncpa [#allocation19], 1
    %s980 = scalar_lea.sflag [#allocation19], 1
    %981 = vsyncpa %s980, 1

// kernel: ast_forward.7
$region0: #{ast_forward.7}
  #allocation0 [shape = 'u32[]', space=smem, size = 0x4, offset = 0x4, fixed_abs, tag = 'smem constant byte address 0x4 - core index']
  #allocation1 [shape = 'u32[144,128]{1,0:T(1,128)}', space=vmem, size = 0x12000, scoped, tag = 'internal scratch']
  #allocation2 [shape = 'f32[10,512]{1,0:T(8,128)}', space=vmem, size = 0x8000, scoped, tag = 'scratch operand']
  %s0 = inlined_call_operand.hbm [shape: bf16[10,128], index: 0, kind: input, shape index: {}]
  %s1 = inlined_call_operand.hbm [shape: f32[10,128], index: 1, kind: input, shape index: {}]
  %s2 = inlined_call_operand.hbm [shape: bf16[128,512], index: 2, kind: input, shape index: {}]
  %s3 = inlined_call_operand.hbm [shape: f32[1,512], index: 3, kind: input, shape index: {}]
  %s4 = inlined_call_operand.hbm [shape: bf16[512,128], index: 4, kind: input, shape index: {}]
  %s5 = inlined_call_operand.hbm [shape: f32[1,128], index: 5, kind: input, shape index: {}]
  %s6 = inlined_call_operand.hbm [shape: f32[1,128], index: 6, kind: input, shape index: {}]
  %s7 = inlined_call_operand.hbm [shape: f32[1,128], index: 7, kind: input, shape index: {}]
  %s8 = inlined_call_operand.hbm [shape: f32[10,128], index: 8, kind: output, shape index: {0}]
  %s9 = inlined_call_operand.hbm [shape: bf16[10,128], index: 9, kind: output, shape index: {1}]
  %10 = xla_tuple %s8, %s9
  %s11 = sld [smem:[#allocation0]]
  $region90: #{ast_forward.7} parent=0
    _
  %s13 = ssub.s32 1, %s11
  %s14 = scalar_select 0, %s13, %s11
  $region1: #{ast_forward.7} parent=0
    #allocation3 [shape = 'u8[4096]{0}', space=vmem, size = 0x1000, scoped, tag = 'input window, operand 0, single buffered']
    #allocation4 [shape = 's32[1]{0}', space=sflag, size = 0x4, scoped, tag = 'scoped memory for ast_forward.7']
    #allocation5 [shape = 's32[1]{0}', space=sflag, size = 0x4, scoped, tag = 'scoped memory for ast_forward.7']
    #allocation6 [shape = 'u8[8192]{0}', space=vmem, size = 0x2000, scoped, tag = 'input window, operand 1, single buffered']
    #allocation7 [shape = 's32[1]{0}', space=sflag, size = 0x4, scoped, tag = 'scoped memory for ast_forward.7']
    #allocation8 [shape = 'u8[131072]{0}', space=vmem, size = 0x20000, scoped, tag = 'input window, operand 2, single buffered']
    #allocation9 [shape = 'u8[2048]{0}', space=vmem, size = 0x800, scoped, tag = 'input window, operand 3, single buffered']
    #allocation10 [shape = 's32[1]{0}', space=sflag, size = 0x4, scoped, tag = 'scoped memory for ast_forward.7']
    #allocation11 [shape = 'u8[131072]{0}', space=vmem, size = 0x20000, scoped, tag = 'input window, operand 4, single buffered']
    #allocation12 [shape = 'u8[512]{0}', space=vmem, size = 0x400, scoped, tag = 'input window, operand 5, single buffered']
    #allocation13 [shape = 's32[1]{0}', space=sflag, size = 0x4, scoped, tag = 'scoped memory for ast_forward.7']
    #allocation14 [shape = 'u8[512]{0}', space=vmem, size = 0x400, scoped, tag = 'input window, operand 6, single buffered']
    #allocation15 [shape = 'u8[512]{0}', space=vmem, size = 0x400, scoped, tag = 'input window, operand 7, single buffered']
    #allocation16 [shape = 's32[1]{0}', space=sflag, size = 0x4, scoped, tag = 'scoped memory for ast_forward.7']
    #allocation17 [shape = 'u8[8192]{0}', space=vmem, size = 0x2000, scoped, tag = 'output window, operand 0, single buffered']
    #allocation18 [shape = 'u8[4096]{0}', space=vmem, size = 0x1000, scoped, tag = 'output window, operand 1, single buffered']
    #allocation19 [shape = 's32[1]{0}', space=sflag, size = 0x4, scoped, tag = 'scoped memory for ast_forward.7']
    %15 = vsyncpa [#allocation4], 0
    %16 = vsyncpa [#allocation7], 0
    %17 = vsyncpa [#allocation10], 0
    %18 = vsyncpa [#allocation13], 0
    %19 = vsyncpa [#allocation16], 0
    %20 = vsyncpa [#allocation5], 0
    %21 = vsyncpa [#allocation19], 0
    // Predicated region
    $region2: #{ast_forward.7} parent=1 // pred_check
      _
    $region3: #{ast_forward.7} parent=1 // pred_check_branch
      %23 = sbr.rel (0) target = $region5
    $region4: #{ast_forward.7} parent=1 // pred_region
      %s25 = ssub.s32 128, 128
      %26 = vsyncadd [#allocation4], %s25
      %s27 = sshll.u32 [#allocation3], 4
      %s28 = int_to_ptr.vmem [resolvable:$true] %s27
      %33 = dma.hbm_to_vmem [thread:$0]  %s0, 128, %s28, [#allocation4], 64, 64, 4
    $region5: #{ast_forward.7} parent=1 // pred_fallthru
      _
    // Predicated region
    $region6: #{ast_forward.7} parent=1 // pred_check
      _
    $region7: #{ast_forward.7} parent=1 // pred_check_branch
      %35 = sbr.rel (0) target = $region9
    $region8: #{ast_forward.7} parent=1 // pred_region
      %s37 = ssub.s32 256, 256
      %38 = vsyncadd [#allocation7], %s37
      %s39 = sshll.u32 [#allocation6], 4
      %s40 = int_to_ptr.vmem [resolvable:$true] %s39
      %45 = dma.hbm_to_vmem [thread:$0]  %s1, 256, %s40, [#allocation7], 128, 128, 8
    $region9: #{ast_forward.7} parent=1 // pred_fallthru
      _
    // Predicated region
    $region10: #{ast_forward.7} parent=1 // pred_check
      _
    $region11: #{ast_forward.7} parent=1 // pred_check_branch
      %47 = sbr.rel (0) target = $region13
    $region12: #{ast_forward.7} parent=1 // pred_region
      %s49 = ssub.s32 4096, 4096
      %50 = vsyncadd [#allocation7], %s49
      %s51 = sshll.u32 [#allocation8], 4
      %s52 = int_to_ptr.vmem [resolvable:$true] %s51
      %57 = dma.hbm_to_vmem [thread:$0]  %s2, 4096, %s52, [#allocation7], 256, 256, 16
    $region13: #{ast_forward.7} parent=1 // pred_fallthru
      _
    // Predicated region
    $region14: #{ast_forward.7} parent=1 // pred_check
      _
    $region15: #{ast_forward.7} parent=1 // pred_check_branch
      %59 = sbr.rel (0) target = $region17
    $region16: #{ast_forward.7} parent=1 // pred_region
      %s61 = ssub.s32 64, 64
      %62 = vsyncadd [#allocation10], %s61
      %s64 = sshll.u32 [#allocation9], 4
      %s65 = int_to_ptr.vmem [resolvable:$true] %s64
      %67 = dma.hbm_to_vmem [thread:$0]  %s3, 64, %s65, [#allocation10]
    $region17: #{ast_forward.7} parent=1 // pred_fallthru
      _
    // Predicated region
    $region18: #{ast_forward.7} parent=1 // pred_check
      _
    $region19: #{ast_forward.7} parent=1 // pred_check_branch
      %69 = sbr.rel (0) target = $region21
    $region20: #{ast_forward.7} parent=1 // pred_region
      %s71 = ssub.s32 4096, 4096
      %72 = vsyncadd [#allocation10], %s71
      %s73 = sshll.u32 [#allocation11], 4
      %s74 = int_to_ptr.vmem [resolvable:$true] %s73
      %79 = dma.hbm_to_vmem [thread:$0]  %s4, 4096, %s74, [#allocation10], 64, 64, 4
    $region21: #{ast_forward.7} parent=1 // pred_fallthru
      _
    // Predicated region
    $region22: #{ast_forward.7} parent=1 // pred_check
      _
    $region23: #{ast_forward.7} parent=1 // pred_check_branch
      %81 = sbr.rel (0) target = $region25
    $region24: #{ast_forward.7} parent=1 // pred_region
      %s83 = ssub.s32 16, 16
      %84 = vsyncadd [#allocation13], %s83
      %s86 = sshll.u32 [#allocation12], 4
      %s87 = int_to_ptr.vmem [resolvable:$true] %s86
      %89 = dma.hbm_to_vmem [thread:$0]  %s5, 16, %s87, [#allocation13]
    $region25: #{ast_forward.7} parent=1 // pred_fallthru
      _
    // Predicated region
    $region26: #{ast_forward.7} parent=1 // pred_check
      _
    $region27: #{ast_forward.7} parent=1 // pred_check_branch
      %91 = sbr.rel (0) target = $region29
    $region28: #{ast_forward.7} parent=1 // pred_region
      %s93 = ssub.s32 16, 16
      %94 = vsyncadd [#allocation13], %s93
      %s96 = sshll.u32 [#allocation14], 4
      %s97 = int_to_ptr.vmem [resolvable:$true] %s96
      %99 = dma.hbm_to_vmem [thread:$0]  %s6, 16, %s97, [#allocation13]
    $region29: #{ast_forward.7} parent=1 // pred_fallthru
      _
    // Predicated region
    $region30: #{ast_forward.7} parent=1 // pred_check
      _
    $region31: #{ast_forward.7} parent=1 // pred_check_branch
      %101 = sbr.rel (0) target = $region33
    $region32: #{ast_forward.7} parent=1 // pred_region
      %s103 = ssub.s32 16, 16
      %104 = vsyncadd [#allocation16], %s103
      %s106 = sshll.u32 [#allocation15], 4
      %s107 = int_to_ptr.vmem [resolvable:$true] %s106
      %109 = dma.hbm_to_vmem [thread:$0]  %s7, 16, %s107, [#allocation16]
    $region33: #{ast_forward.7} parent=1 // pred_fallthru
      _
    // Predicated region
    $region34: #{ast_forward.7} parent=1 // pred_check
      _
    $region35: #{ast_forward.7} parent=1 // pred_check_branch
      %111 = sbr.rel (0) target = $region37
    $region36: #{ast_forward.7} parent=1 // pred_region
      %112 = dma.done [#allocation4], 128
    $region37: #{ast_forward.7} parent=1 // pred_fallthru
      _
    // Predicated region
    $region38: #{ast_forward.7} parent=1 // pred_check
      _
    $region39: #{ast_forward.7} parent=1 // pred_check_branch
      %114 = sbr.rel (0) target = $region41
    $region40: #{ast_forward.7} parent=1 // pred_region
      %115 = dma.done [#allocation7], 256
    $region41: #{ast_forward.7} parent=1 // pred_fallthru
      _
    // Predicated region
    $region42: #{ast_forward.7} parent=1 // pred_check
      _
    $region43: #{ast_forward.7} parent=1 // pred_check_branch
      %117 = sbr.rel (0) target = $region45
    $region44: #{ast_forward.7} parent=1 // pred_region
      %118 = dma.done [#allocation7], 4096
    $region45: #{ast_forward.7} parent=1 // pred_fallthru
      _
    // Predicated region
    $region46: #{ast_forward.7} parent=1 // pred_check
      _
    $region47: #{ast_forward.7} parent=1 // pred_check_branch
      %120 = sbr.rel (0) target = $region49
    $region48: #{ast_forward.7} parent=1 // pred_region
      %121 = dma.done [#allocation10], 64
    $region49: #{ast_forward.7} parent=1 // pred_fallthru
      _
    // Predicated region
    $region50: #{ast_forward.7} parent=1 // pred_check
      _
    $region51: #{ast_forward.7} parent=1 // pred_check_branch
      %123 = sbr.rel (0) target = $region53
    $region52: #{ast_forward.7} parent=1 // pred_region
      %124 = dma.done [#allocation10], 4096
    $region53: #{ast_forward.7} parent=1 // pred_fallthru
      _
    // Predicated region
    $region54: #{ast_forward.7} parent=1 // pred_check
      _
    $region55: #{ast_forward.7} parent=1 // pred_check_branch
      %126 = sbr.rel (0) target = $region57
    $region56: #{ast_forward.7} parent=1 // pred_region
      %127 = dma.done [#allocation13], 16
    $region57: #{ast_forward.7} parent=1 // pred_fallthru
      _
    // Predicated region
    $region58: #{ast_forward.7} parent=1 // pred_check
      _
    $region59: #{ast_forward.7} parent=1 // pred_check_branch
      %129 = sbr.rel (0) target = $region61
    $region60: #{ast_forward.7} parent=1 // pred_region
      %130 = dma.done [#allocation13], 16
    $region61: #{ast_forward.7} parent=1 // pred_fallthru
      _
    // Predicated region
    $region62: #{ast_forward.7} parent=1 // pred_check
      _
    $region63: #{ast_forward.7} parent=1 // pred_check_branch
      %132 = sbr.rel (0) target = $region65
    $region64: #{ast_forward.7} parent=1 // pred_region
      %133 = dma.done [#allocation16], 16
    $region65: #{ast_forward.7} parent=1 // pred_fallthru
      _
    %p135 = scmp.eq.s32.totalorder 0, 0
    // Predicated region
    $region66: #{ast_forward.7} parent=1 // pred_check
      %p136 = pneg %p135
    $region67: #{ast_forward.7} parent=1 // pred_check_branch
      %138 = sbr.rel (%p136) target = $region69
    $region68: #{ast_forward.7} parent=1 // pred_region
      %139 = vst [vmem:[#allocation2] sm:$0xff] 0.0
      %140 = vst [vmem:[#allocation2 + $0x8] sm:$0xff] 0.0
      %141 = vst [vmem:[#allocation2 + $0x10] sm:$0xff] 0.0
      %142 = vst [vmem:[#allocation2 + $0x18] sm:$0xff] 0.0
      %143 = vst [vmem:[#allocation2 + $0x20] sm:$0x3] 0.0
      %144 = vst [vmem:[#allocation2 + $0x28] sm:$0x3] 0.0
      %145 = vst [vmem:[#allocation2 + $0x30] sm:$0x3] 0.0
      %146 = vst [vmem:[#allocation2 + $0x38] sm:$0x3] 0.0
    $region69: #{ast_forward.7} parent=1 // pred_fallthru
      _
    %v147 = vld [vmem:[#allocation2] sm:$0xff]
    %v148 = vld [vmem:[#allocation2 + $0x8] sm:$0xff]
    %v149 = vld [vmem:[#allocation2 + $0x10] sm:$0xff]
    %v150 = vld [vmem:[#allocation2 + $0x18] sm:$0xff]
    %v151 = vld [vmem:[#allocation2 + $0x20] sm:$0x3]
    %v152 = vld [vmem:[#allocation2 + $0x28] sm:$0x3]
    %v153 = vld [vmem:[#allocation2 + $0x30] sm:$0x3]
    %v154 = vld [vmem:[#allocation2 + $0x38] sm:$0x3]
    %v155 = vld [vmem:[#allocation3] sm:$0xf]
    %v156 = vld [vmem:[#allocation3 + $0x4] sm:$0x1]
    %v157 = vld [vmem:[#allocation8] sm:$0xff]
    %v158 = vld [vmem:[#allocation8 + $0x8] sm:$0xff]
    %v159 = vld [vmem:[#allocation8 + $0x10] sm:$0xff]
    %v160 = vld [vmem:[#allocation8 + $0x18] sm:$0xff]
    %v161 = vld [vmem:[#allocation8 + $0x20] sm:$0xff]
    %v162 = vld [vmem:[#allocation8 + $0x28] sm:$0xff]
    %v163 = vld [vmem:[#allocation8 + $0x30] sm:$0xff]
    %v164 = vld [vmem:[#allocation8 + $0x38] sm:$0xff]
    %v165 = vld [vmem:[#allocation8 + $0x40] sm:$0xff]
    %v166 = vld [vmem:[#allocation8 + $0x48] sm:$0xff]
    %v167 = vld [vmem:[#allocation8 + $0x50] sm:$0xff]
    %v168 = vld [vmem:[#allocation8 + $0x58] sm:$0xff]
    %v169 = vld [vmem:[#allocation8 + $0x60] sm:$0xff]
    %v170 = vld [vmem:[#allocation8 + $0x68] sm:$0xff]
    %v171 = vld [vmem:[#allocation8 + $0x70] sm:$0xff]
    %v172 = vld [vmem:[#allocation8 + $0x78] sm:$0xff]
    %v173 = vld [vmem:[#allocation8 + $0x80] sm:$0xff]
    %v174 = vld [vmem:[#allocation8 + $0x88] sm:$0xff]
    %v175 = vld [vmem:[#allocation8 + $0x90] sm:$0xff]
    %v176 = vld [vmem:[#allocation8 + $0x98] sm:$0xff]
    %v177 = vld [vmem:[#allocation8 + $0xa0] sm:$0xff]
    %v178 = vld [vmem:[#allocation8 + $0xa8] sm:$0xff]
    %v179 = vld [vmem:[#allocation8 + $0xb0] sm:$0xff]
    %v180 = vld [vmem:[#allocation8 + $0xb8] sm:$0xff]
    %v181 = vld [vmem:[#allocation8 + $0xc0] sm:$0xff]
    %v182 = vld [vmem:[#allocation8 + $0xc8] sm:$0xff]
    %v183 = vld [vmem:[#allocation8 + $0xd0] sm:$0xff]
    %v184 = vld [vmem:[#allocation8 + $0xd8] sm:$0xff]
    %v185 = vld [vmem:[#allocation8 + $0xe0] sm:$0xff]
    %v186 = vld [vmem:[#allocation8 + $0xe8] sm:$0xff]
    %v187 = vld [vmem:[#allocation8 + $0xf0] sm:$0xff]
    %v188 = vld [vmem:[#allocation8 + $0xf8] sm:$0xff]
    %v191 = vunpack.c.l.b16 %v155
    %v192 = vunpack.c.l.b16 %v156
    %v193 = vpack.c.b16 %v192, %v191
    %v227 = vunpack.c.l.b16 %v157
    %v228 = vunpack.c.h.b16 %v157
    %v229 = vunpack.c.l.b16 %v158
    %v230 = vunpack.c.h.b16 %v158
    %v231 = vunpack.c.l.b16 %v159
    %v232 = vunpack.c.h.b16 %v159
    %v233 = vunpack.c.l.b16 %v160
    %v234 = vunpack.c.h.b16 %v160
    %v235 = vunpack.c.l.b16 %v161
    %v236 = vunpack.c.h.b16 %v161
    %v237 = vunpack.c.l.b16 %v162
    %v238 = vunpack.c.h.b16 %v162
    %v239 = vunpack.c.l.b16 %v163
    %v240 = vunpack.c.h.b16 %v163
    %v241 = vunpack.c.l.b16 %v164
    %v242 = vunpack.c.h.b16 %v164
    %v243 = vunpack.c.l.b16 %v165
    %v244 = vunpack.c.h.b16 %v165
    %v245 = vunpack.c.l.b16 %v166
    %v246 = vunpack.c.h.b16 %v166
    %v247 = vunpack.c.l.b16 %v167
    %v248 = vunpack.c.h.b16 %v167
    %v249 = vunpack.c.l.b16 %v168
    %v250 = vunpack.c.h.b16 %v168
    %v251 = vunpack.c.l.b16 %v169
    %v252 = vunpack.c.h.b16 %v169
    %v253 = vunpack.c.l.b16 %v170
    %v254 = vunpack.c.h.b16 %v170
    %v255 = vunpack.c.l.b16 %v171
    %v256 = vunpack.c.h.b16 %v171
    %v257 = vunpack.c.l.b16 %v172
    %v258 = vunpack.c.h.b16 %v172
    %v259 = vunpack.c.l.b16 %v173
    %v260 = vunpack.c.h.b16 %v173
    %v261 = vunpack.c.l.b16 %v174
    %v262 = vunpack.c.h.b16 %v174
    %v263 = vunpack.c.l.b16 %v175
    %v264 = vunpack.c.h.b16 %v175
    %v265 = vunpack.c.l.b16 %v176
    %v266 = vunpack.c.h.b16 %v176
    %v267 = vunpack.c.l.b16 %v177
    %v268 = vunpack.c.h.b16 %v177
    %v269 = vunpack.c.l.b16 %v178
    %v270 = vunpack.c.h.b16 %v178
    %v271 = vunpack.c.l.b16 %v179
    %v272 = vunpack.c.h.b16 %v179
    %v273 = vunpack.c.l.b16 %v180
    %v274 = vunpack.c.h.b16 %v180
    %v275 = vunpack.c.l.b16 %v181
    %v276 = vunpack.c.h.b16 %v181
    %v277 = vunpack.c.l.b16 %v182
    %v278 = vunpack.c.h.b16 %v182
    %v279 = vunpack.c.l.b16 %v183
    %v280 = vunpack.c.h.b16 %v183
    %v281 = vunpack.c.l.b16 %v184
    %v282 = vunpack.c.h.b16 %v184
    %v283 = vunpack.c.l.b16 %v185
    %v284 = vunpack.c.h.b16 %v185
    %v285 = vunpack.c.l.b16 %v186
    %v286 = vunpack.c.h.b16 %v186
    %v287 = vunpack.c.l.b16 %v187
    %v288 = vunpack.c.h.b16 %v187
    %v289 = vunpack.c.l.b16 %v188
    %v290 = vunpack.c.h.b16 %v188
    %v291 = vpack.c.b16 %v231, %v227
    %v292 = vpack.c.b16 %v232, %v228
    %v293 = vpack.c.b16 %v233, %v229
    %v294 = vpack.c.b16 %v234, %v230
    %v295 = vpack.c.b16 %v239, %v235
    %v296 = vpack.c.b16 %v240, %v236
    %v297 = vpack.c.b16 %v241, %v237
    %v298 = vpack.c.b16 %v242, %v238
    %v299 = vpack.c.b16 %v247, %v243
    %v300 = vpack.c.b16 %v248, %v244
    %v301 = vpack.c.b16 %v249, %v245
    %v302 = vpack.c.b16 %v250, %v246
    %v303 = vpack.c.b16 %v255, %v251
    %v304 = vpack.c.b16 %v256, %v252
    %v305 = vpack.c.b16 %v257, %v253
    %v306 = vpack.c.b16 %v258, %v254
    %v307 = vpack.c.b16 %v263, %v259
    %v308 = vpack.c.b16 %v264, %v260
    %v309 = vpack.c.b16 %v265, %v261
    %v310 = vpack.c.b16 %v266, %v262
    %v311 = vpack.c.b16 %v271, %v267
    %v312 = vpack.c.b16 %v272, %v268
    %v313 = vpack.c.b16 %v273, %v269
    %v314 = vpack.c.b16 %v274, %v270
    %v315 = vpack.c.b16 %v279, %v275
    %v316 = vpack.c.b16 %v280, %v276
    %v317 = vpack.c.b16 %v281, %v277
    %v318 = vpack.c.b16 %v282, %v278
    %v319 = vpack.c.b16 %v287, %v283
    %v320 = vpack.c.b16 %v288, %v284
    %v321 = vpack.c.b16 %v289, %v285
    %v322 = vpack.c.b16 %v290, %v286
    %355 = vmatprep.subr.bf16.mxu0 %v292
    %356 = vmatpush1.bf16.msra.mxu0 %v291
    %357 = vmatprep.subr.bf16.mxu0 %v296
    %358 = vmatpush1.bf16.msra.mxu0 %v295
    %359 = vmatprep.subr.bf16.mxu0 %v300
    %360 = vmatpush1.bf16.msra.mxu0 %v299
    %361 = vmatprep.subr.bf16.mxu0 %v304
    %362 = vmatpush1.bf16.msra.mxu0 %v303
    %363 = vmatprep.subr.bf16.mxu0 %v308
    %364 = vmatpush1.bf16.msra.mxu0 %v307
    %365 = vmatprep.subr.bf16.mxu0 %v312
    %366 = vmatpush1.bf16.msra.mxu0 %v311
    %367 = vmatprep.subr.bf16.mxu0 %v316
    %368 = vmatpush1.bf16.msra.mxu0 %v315
    %369 = vmatprep.subr.bf16.mxu0 %v320
    %370 = vmatpush1.bf16.msra.mxu0 %v319
    %371 = vmatprep.subr.bf16.mxu0 0
    %372 = vmatpush1.bf16.msra.mxu0 0
    %373 = vmatprep.subr.bf16.mxu0 0
    %374 = vmatpush1.bf16.msra.mxu0 0
    %375 = vmatprep.subr.bf16.mxu0 0
    %376 = vmatpush1.bf16.msra.mxu0 0
    %377 = vmatprep.subr.bf16.mxu0 0
    %378 = vmatpush1.bf16.msra.mxu0 0
    %379 = vmatprep.subr.bf16.mxu0 0
    %380 = vmatpush1.bf16.msra.mxu0 0
    %381 = vmatprep.subr.bf16.mxu0 0
    %382 = vmatpush1.bf16.msra.mxu0 0
    %383 = vmatprep.subr.bf16.mxu0 0
    %384 = vmatpush1.bf16.msra.mxu0 0
    %385 = vmatprep.subr.bf16.mxu0 0
    %386 = vmatpush1.bf16.msra.mxu0 0
    %387 = vmatprep.mubr.bf16.mxu0 0
    %388 = vmatmul.mubr.bf16.gmra.mrb[0].mxu0 %v193
    %v389 = vpop.f32.mrb[0].mxu0
    %v390 = vadd.f32 0.0, %v389
    %v391 = vpop.f32.mrb[0].mxu0
    %v392 = vadd.f32 0.0, %v391
    %v393 = vpop.f32.mrb[0].mxu0
    %v394 = vadd.f32 0.0, %v393
    %v395 = vpop.f32.mrb[0].mxu0
    %v396 = vadd.f32 0.0, %v395
    %397 = vdwg.mxu0
    %398 = vmatprep.subr.bf16.mxu0 %v294
    %399 = vmatpush1.bf16.msra.mxu0 %v293
    %400 = vmatprep.subr.bf16.mxu0 %v298
    %401 = vmatpush1.bf16.msra.mxu0 %v297
    %402 = vmatprep.subr.bf16.mxu0 %v302
    %403 = vmatpush1.bf16.msra.mxu0 %v301
    %404 = vmatprep.subr.bf16.mxu0 %v306
    %405 = vmatpush1.bf16.msra.mxu0 %v305
    %406 = vmatprep.subr.bf16.mxu0 %v310
    %407 = vmatpush1.bf16.msra.mxu0 %v309
    %408 = vmatprep.subr.bf16.mxu0 %v314
    %409 = vmatpush1.bf16.msra.mxu0 %v313
    %410 = vmatprep.subr.bf16.mxu0 %v318
    %411 = vmatpush1.bf16.msra.mxu0 %v317
    %412 = vmatprep.subr.bf16.mxu0 %v322
    %413 = vmatpush1.bf16.msra.mxu0 %v321
    %414 = vmatprep.subr.bf16.mxu0 0
    %415 = vmatpush1.bf16.msra.mxu0 0
    %416 = vmatprep.subr.bf16.mxu0 0
    %417 = vmatpush1.bf16.msra.mxu0 0
    %418 = vmatprep.subr.bf16.mxu0 0
    %419 = vmatpush1.bf16.msra.mxu0 0
    %420 = vmatprep.subr.bf16.mxu0 0
    %421 = vmatpush1.bf16.msra.mxu0 0
    %422 = vmatprep.subr.bf16.mxu0 0
    %423 = vmatpush1.bf16.msra.mxu0 0
    %424 = vmatprep.subr.bf16.mxu0 0
    %425 = vmatpush1.bf16.msra.mxu0 0
    %426 = vmatprep.subr.bf16.mxu0 0
    %427 = vmatpush1.bf16.msra.mxu0 0
    %428 = vmatprep.subr.bf16.mxu0 0
    %429 = vmatpush1.bf16.msra.mxu0 0
    %430 = vmatprep.mubr.bf16.mxu0 0
    %431 = vmatmul.mubr.bf16.gmra.mrb[0].mxu0 %v193
    %v432 = vpop.f32.mrb[0].mxu0
    %v433 = vadd.f32 0.0, %v432
    %v434 = vpop.f32.mrb[0].mxu0
    %v435 = vadd.f32 0.0, %v434
    %v436 = vpop.f32.mrb[0].mxu0
    %v437 = vadd.f32 0.0, %v436
    %v438 = vpop.f32.mrb[0].mxu0
    %v439 = vadd.f32 0.0, %v438
    %440 = vdwg.mxu0
    %v441 = vadd.f32 %v147, %v390
    %v442 = vadd.f32 %v148, %v392
    %v443 = vadd.f32 %v149, %v433
    %v444 = vadd.f32 %v150, %v435
    %v445 = vadd.f32 %v151, %v394
    %v446 = vadd.f32 %v152, %v396
    %v447 = vadd.f32 %v153, %v437
    %v448 = vadd.f32 %v154, %v439
    %449 = vst [vmem:[#allocation2] sm:$0xff] %v441
    %450 = vst [vmem:[#allocation2 + $0x8] sm:$0xff] %v442
    %451 = vst [vmem:[#allocation2 + $0x10] sm:$0xff] %v443
    %452 = vst [vmem:[#allocation2 + $0x18] sm:$0xff] %v444
    %453 = vst [vmem:[#allocation2 + $0x20] sm:$0x3] %v445
    %454 = vst [vmem:[#allocation2 + $0x28] sm:$0x3] %v446
    %455 = vst [vmem:[#allocation2 + $0x30] sm:$0x3] %v447
    %456 = vst [vmem:[#allocation2 + $0x38] sm:$0x3] %v448
    // Predicated region
    $region70: #{ast_forward.7} parent=1 // pred_check
      %p457 = pneg %p135
    $region71: #{ast_forward.7} parent=1 // pred_check_branch
      %459 = sbr.rel (%p457) target = $region73
    $region72: #{ast_forward.7} parent=1 // pred_region
      %v460 = vld [vmem:[#allocation2] sm:$0xff]
      %v461 = vld [vmem:[#allocation2 + $0x8] sm:$0xff]
      %v462 = vld [vmem:[#allocation2 + $0x10] sm:$0xff]
      %v463 = vld [vmem:[#allocation2 + $0x18] sm:$0xff]
      %v464 = vld [vmem:[#allocation2 + $0x20] sm:$0x3]
      %v465 = vld [vmem:[#allocation2 + $0x28] sm:$0x3]
      %v466 = vld [vmem:[#allocation2 + $0x30] sm:$0x3]
      %v467 = vld [vmem:[#allocation2 + $0x38] sm:$0x3]
      %v468 = vld [vmem:[#allocation9] sm:$0xf]
      %v470 = vlaneseq
      %v471 = vshrl.u32 %v470, 7
      %v472 = vsub.s32 0, %v471
      %v473 = vrot.slane %v468, %v472
      %v474 = vlaneseq
      %v475 = vshrl.u32 %v474, 7
      %v476 = vsub.s32 1, %v475
      %v477 = vrot.slane %v468, %v476
      %v478 = vlaneseq
      %v479 = vshrl.u32 %v478, 7
      %v480 = vsub.s32 2, %v479
      %v481 = vrot.slane %v468, %v480
      %v482 = vlaneseq
      %v483 = vshrl.u32 %v482, 7
      %v484 = vsub.s32 3, %v483
      %v485 = vrot.slane %v468, %v484
      %v490 = vadd.f32 %v460, %v473
      %v491 = vadd.f32 %v461, %v477
      %v492 = vadd.f32 %v462, %v481
      %v493 = vadd.f32 %v463, %v485
      %v494 = vadd.f32 %v464, %v473
      %v495 = vadd.f32 %v465, %v477
      %v496 = vadd.f32 %v466, %v481
      %v497 = vadd.f32 %v467, %v485
      %v498 = vmax.f32 %v490, 0.0
      %v499 = vmax.f32 %v491, 0.0
      %v500 = vmax.f32 %v492, 0.0
      %v501 = vmax.f32 %v493, 0.0
      %v502 = vmax.f32 %v494, 0.0
      %v503 = vmax.f32 %v495, 0.0
      %v504 = vmax.f32 %v496, 0.0
      %v505 = vmax.f32 %v497, 0.0
      %v506 = vpack.c.bf16 %v502, %v498
      %v507 = vpack.c.bf16 %v503, %v499
      %v508 = vpack.c.bf16 %v504, %v500
      %v509 = vpack.c.bf16 %v505, %v501
      %v510 = vld [vmem:[#allocation11] sm:$0xf]
      %v511 = vld [vmem:[#allocation11 + $0x4] sm:$0xf]
      %v512 = vld [vmem:[#allocation11 + $0x8] sm:$0xf]
      %v513 = vld [vmem:[#allocation11 + $0xc] sm:$0xf]
      %v514 = vld [vmem:[#allocation11 + $0x10] sm:$0xf]
      %v515 = vld [vmem:[#allocation11 + $0x14] sm:$0xf]
      %v516 = vld [vmem:[#allocation11 + $0x18] sm:$0xf]
      %v517 = vld [vmem:[#allocation11 + $0x1c] sm:$0xf]
      %v518 = vld [vmem:[#allocation11 + $0x20] sm:$0xf]
      %v519 = vld [vmem:[#allocation11 + $0x24] sm:$0xf]
      %v520 = vld [vmem:[#allocation11 + $0x28] sm:$0xf]
      %v521 = vld [vmem:[#allocation11 + $0x2c] sm:$0xf]
      %v522 = vld [vmem:[#allocation11 + $0x30] sm:$0xf]
      %v523 = vld [vmem:[#allocation11 + $0x34] sm:$0xf]
      %v524 = vld [vmem:[#allocation11 + $0x38] sm:$0xf]
      %v525 = vld [vmem:[#allocation11 + $0x3c] sm:$0xf]
      %v526 = vld [vmem:[#allocation11 + $0x40] sm:$0xf]
      %v527 = vld [vmem:[#allocation11 + $0x44] sm:$0xf]
      %v528 = vld [vmem:[#allocation11 + $0x48] sm:$0xf]
      %v529 = vld [vmem:[#allocation11 + $0x4c] sm:$0xf]
      %v530 = vld [vmem:[#allocation11 + $0x50] sm:$0xf]
      %v531 = vld [vmem:[#allocation11 + $0x54] sm:$0xf]
      %v532 = vld [vmem:[#allocation11 + $0x58] sm:$0xf]
      %v533 = vld [vmem:[#allocation11 + $0x5c] sm:$0xf]
      %v534 = vld [vmem:[#allocation11 + $0x60] sm:$0xf]
      %v535 = vld [vmem:[#allocation11 + $0x64] sm:$0xf]
      %v536 = vld [vmem:[#allocation11 + $0x68] sm:$0xf]
      %v537 = vld [vmem:[#allocation11 + $0x6c] sm:$0xf]
      %v538 = vld [vmem:[#allocation11 + $0x70] sm:$0xf]
      %v539 = vld [vmem:[#allocation11 + $0x74] sm:$0xf]
      %v540 = vld [vmem:[#allocation11 + $0x78] sm:$0xf]
      %v541 = vld [vmem:[#allocation11 + $0x7c] sm:$0xf]
      %v542 = vld [vmem:[#allocation11 + $0x80] sm:$0xf]
      %v543 = vld [vmem:[#allocation11 + $0x84] sm:$0xf]
      %v544 = vld [vmem:[#allocation11 + $0x88] sm:$0xf]
      %v545 = vld [vmem:[#allocation11 + $0x8c] sm:$0xf]
      %v546 = vld [vmem:[#allocation11 + $0x90] sm:$0xf]
      %v547 = vld [vmem:[#allocation11 + $0x94] sm:$0xf]
      %v548 = vld [vmem:[#allocation11 + $0x98] sm:$0xf]
      %v549 = vld [vmem:[#allocation11 + $0x9c] sm:$0xf]
      %v550 = vld [vmem:[#allocation11 + $0xa0] sm:$0xf]
      %v551 = vld [vmem:[#allocation11 + $0xa4] sm:$0xf]
      %v552 = vld [vmem:[#allocation11 + $0xa8] sm:$0xf]
      %v553 = vld [vmem:[#allocation11 + $0xac] sm:$0xf]
      %v554 = vld [vmem:[#allocation11 + $0xb0] sm:$0xf]
      %v555 = vld [vmem:[#allocation11 + $0xb4] sm:$0xf]
      %v556 = vld [vmem:[#allocation11 + $0xb8] sm:$0xf]
      %v557 = vld [vmem:[#allocation11 + $0xbc] sm:$0xf]
      %v558 = vld [vmem:[#allocation11 + $0xc0] sm:$0xf]
      %v559 = vld [vmem:[#allocation11 + $0xc4] sm:$0xf]
      %v560 = vld [vmem:[#allocation11 + $0xc8] sm:$0xf]
      %v561 = vld [vmem:[#allocation11 + $0xcc] sm:$0xf]
      %v562 = vld [vmem:[#allocation11 + $0xd0] sm:$0xf]
      %v563 = vld [vmem:[#allocation11 + $0xd4] sm:$0xf]
      %v564 = vld [vmem:[#allocation11 + $0xd8] sm:$0xf]
      %v565 = vld [vmem:[#allocation11 + $0xdc] sm:$0xf]
      %v566 = vld [vmem:[#allocation11 + $0xe0] sm:$0xf]
      %v567 = vld [vmem:[#allocation11 + $0xe4] sm:$0xf]
      %v568 = vld [vmem:[#allocation11 + $0xe8] sm:$0xf]
      %v569 = vld [vmem:[#allocation11 + $0xec] sm:$0xf]
      %v570 = vld [vmem:[#allocation11 + $0xf0] sm:$0xf]
      %v571 = vld [vmem:[#allocation11 + $0xf4] sm:$0xf]
      %v572 = vld [vmem:[#allocation11 + $0xf8] sm:$0xf]
      %v573 = vld [vmem:[#allocation11 + $0xfc] sm:$0xf]
      %v574 = vld [vmem:[#allocation12] sm:$0x1]
      %v576 = vlaneseq
      %v577 = vshrl.u32 %v576, 7
      %v578 = vsub.s32 0, %v577
      %v579 = vrot.slane %v574, %v578
      %v645 = vunpack.c.l.b16 %v510
      %v646 = vunpack.c.l.b16 %v511
      %v647 = vunpack.c.l.b16 %v512
      %v648 = vunpack.c.l.b16 %v513
      %v649 = vunpack.c.l.b16 %v514
      %v650 = vunpack.c.l.b16 %v515
      %v651 = vunpack.c.l.b16 %v516
      %v652 = vunpack.c.l.b16 %v517
      %v653 = vunpack.c.l.b16 %v518
      %v654 = vunpack.c.l.b16 %v519
      %v655 = vunpack.c.l.b16 %v520
      %v656 = vunpack.c.l.b16 %v521
      %v657 = vunpack.c.l.b16 %v522
      %v658 = vunpack.c.l.b16 %v523
      %v659 = vunpack.c.l.b16 %v524
      %v660 = vunpack.c.l.b16 %v525
      %v661 = vunpack.c.l.b16 %v526
      %v662 = vunpack.c.l.b16 %v527
      %v663 = vunpack.c.l.b16 %v528
      %v664 = vunpack.c.l.b16 %v529
      %v665 = vunpack.c.l.b16 %v530
      %v666 = vunpack.c.l.b16 %v531
      %v667 = vunpack.c.l.b16 %v532
      %v668 = vunpack.c.l.b16 %v533
      %v669 = vunpack.c.l.b16 %v534
      %v670 = vunpack.c.l.b16 %v535
      %v671 = vunpack.c.l.b16 %v536
      %v672 = vunpack.c.l.b16 %v537
      %v673 = vunpack.c.l.b16 %v538
      %v674 = vunpack.c.l.b16 %v539
      %v675 = vunpack.c.l.b16 %v540
      %v676 = vunpack.c.l.b16 %v541
      %v677 = vunpack.c.l.b16 %v542
      %v678 = vunpack.c.l.b16 %v543
      %v679 = vunpack.c.l.b16 %v544
      %v680 = vunpack.c.l.b16 %v545
      %v681 = vunpack.c.l.b16 %v546
      %v682 = vunpack.c.l.b16 %v547
      %v683 = vunpack.c.l.b16 %v548
      %v684 = vunpack.c.l.b16 %v549
      %v685 = vunpack.c.l.b16 %v550
      %v686 = vunpack.c.l.b16 %v551
      %v687 = vunpack.c.l.b16 %v552
      %v688 = vunpack.c.l.b16 %v553
      %v689 = vunpack.c.l.b16 %v554
      %v690 = vunpack.c.l.b16 %v555
      %v691 = vunpack.c.l.b16 %v556
      %v692 = vunpack.c.l.b16 %v557
      %v693 = vunpack.c.l.b16 %v558
      %v694 = vunpack.c.l.b16 %v559
      %v695 = vunpack.c.l.b16 %v560
      %v696 = vunpack.c.l.b16 %v561
      %v697 = vunpack.c.l.b16 %v562
      %v698 = vunpack.c.l.b16 %v563
      %v699 = vunpack.c.l.b16 %v564
      %v700 = vunpack.c.l.b16 %v565
      %v701 = vunpack.c.l.b16 %v566
      %v702 = vunpack.c.l.b16 %v567
      %v703 = vunpack.c.l.b16 %v568
      %v704 = vunpack.c.l.b16 %v569
      %v705 = vunpack.c.l.b16 %v570
      %v706 = vunpack.c.l.b16 %v571
      %v707 = vunpack.c.l.b16 %v572
      %v708 = vunpack.c.l.b16 %v573
      %v709 = vpack.c.b16 %v646, %v645
      %v710 = vpack.c.b16 %v648, %v647
      %v711 = vpack.c.b16 %v650, %v649
      %v712 = vpack.c.b16 %v652, %v651
      %v713 = vpack.c.b16 %v654, %v653
      %v714 = vpack.c.b16 %v656, %v655
      %v715 = vpack.c.b16 %v658, %v657
      %v716 = vpack.c.b16 %v660, %v659
      %v717 = vpack.c.b16 %v662, %v661
      %v718 = vpack.c.b16 %v664, %v663
      %v719 = vpack.c.b16 %v666, %v665
      %v720 = vpack.c.b16 %v668, %v667
      %v721 = vpack.c.b16 %v670, %v669
      %v722 = vpack.c.b16 %v672, %v671
      %v723 = vpack.c.b16 %v674, %v673
      %v724 = vpack.c.b16 %v676, %v675
      %v725 = vpack.c.b16 %v678, %v677
      %v726 = vpack.c.b16 %v680, %v679
      %v727 = vpack.c.b16 %v682, %v681
      %v728 = vpack.c.b16 %v684, %v683
      %v729 = vpack.c.b16 %v686, %v685
      %v730 = vpack.c.b16 %v688, %v687
      %v731 = vpack.c.b16 %v690, %v689
      %v732 = vpack.c.b16 %v692, %v691
      %v733 = vpack.c.b16 %v694, %v693
      %v734 = vpack.c.b16 %v696, %v695
      %v735 = vpack.c.b16 %v698, %v697
      %v736 = vpack.c.b16 %v700, %v699
      %v737 = vpack.c.b16 %v702, %v701
      %v738 = vpack.c.b16 %v704, %v703
      %v739 = vpack.c.b16 %v706, %v705
      %v740 = vpack.c.b16 %v708, %v707
      %773 = vmatprep.subr.bf16.mxu0 0
      %774 = vmatpush1.bf16.msra.mxu0 %v709
      %775 = vmatprep.subr.bf16.mxu0 0
      %776 = vmatpush1.bf16.msra.mxu0 %v710
      %777 = vmatprep.subr.bf16.mxu0 0
      %778 = vmatpush1.bf16.msra.mxu0 %v711
      %779 = vmatprep.subr.bf16.mxu0 0
      %780 = vmatpush1.bf16.msra.mxu0 %v712
      %781 = vmatprep.subr.bf16.mxu0 0
      %782 = vmatpush1.bf16.msra.mxu0 %v713
      %783 = vmatprep.subr.bf16.mxu0 0
      %784 = vmatpush1.bf16.msra.mxu0 %v714
      %785 = vmatprep.subr.bf16.mxu0 0
      %786 = vmatpush1.bf16.msra.mxu0 %v715
      %787 = vmatprep.subr.bf16.mxu0 0
      %788 = vmatpush1.bf16.msra.mxu0 %v716
      %789 = vmatprep.subr.bf16.mxu0 0
      %790 = vmatpush1.bf16.msra.mxu0 %v717
      %791 = vmatprep.subr.bf16.mxu0 0
      %792 = vmatpush1.bf16.msra.mxu0 %v718
      %793 = vmatprep.subr.bf16.mxu0 0
      %794 = vmatpush1.bf16.msra.mxu0 %v719
      %795 = vmatprep.subr.bf16.mxu0 0
      %796 = vmatpush1.bf16.msra.mxu0 %v720
      %797 = vmatprep.subr.bf16.mxu0 0
      %798 = vmatpush1.bf16.msra.mxu0 %v721
      %799 = vmatprep.subr.bf16.mxu0 0
      %800 = vmatpush1.bf16.msra.mxu0 %v722
      %801 = vmatprep.subr.bf16.mxu0 0
      %802 = vmatpush1.bf16.msra.mxu0 %v723
      %803 = vmatprep.subr.bf16.mxu0 0
      %804 = vmatpush1.bf16.msra.mxu0 %v724
      %805 = vmatprep.mubr.bf16.mxu0 %v507
      %806 = vmatmul.mubr.bf16.gmra.mrb[0].mxu0 %v506
      %v807 = vpop.f32.mrb[0].mxu0
      %v808 = vadd.f32 %v579, %v807
      %v809 = vpop.f32.mrb[0].mxu0
      %v810 = vpop.f32.mrb[0].mxu0
      %v811 = vadd.f32 %v579, %v810
      %v812 = vpop.f32.mrb[0].mxu0
      %813 = vdwg.mxu0
      %814 = vmatprep.subr.bf16.mxu0 0
      %815 = vmatpush1.bf16.msra.mxu0 %v725
      %816 = vmatprep.subr.bf16.mxu0 0
      %817 = vmatpush1.bf16.msra.mxu0 %v726
      %818 = vmatprep.subr.bf16.mxu0 0
      %819 = vmatpush1.bf16.msra.mxu0 %v727
      %820 = vmatprep.subr.bf16.mxu0 0
      %821 = vmatpush1.bf16.msra.mxu0 %v728
      %822 = vmatprep.subr.bf16.mxu0 0
      %823 = vmatpush1.bf16.msra.mxu0 %v729
      %824 = vmatprep.subr.bf16.mxu0 0
      %825 = vmatpush1.bf16.msra.mxu0 %v730
      %826 = vmatprep.subr.bf16.mxu0 0
      %827 = vmatpush1.bf16.msra.mxu0 %v731
      %828 = vmatprep.subr.bf16.mxu0 0
      %829 = vmatpush1.bf16.msra.mxu0 %v732
      %830 = vmatprep.subr.bf16.mxu0 0
      %831 = vmatpush1.bf16.msra.mxu0 %v733
      %832 = vmatprep.subr.bf16.mxu0 0
      %833 = vmatpush1.bf16.msra.mxu0 %v734
      %834 = vmatprep.subr.bf16.mxu0 0
      %835 = vmatpush1.bf16.msra.mxu0 %v735
      %836 = vmatprep.subr.bf16.mxu0 0
      %837 = vmatpush1.bf16.msra.mxu0 %v736
      %838 = vmatprep.subr.bf16.mxu0 0
      %839 = vmatpush1.bf16.msra.mxu0 %v737
      %840 = vmatprep.subr.bf16.mxu0 0
      %841 = vmatpush1.bf16.msra.mxu0 %v738
      %842 = vmatprep.subr.bf16.mxu0 0
      %843 = vmatpush1.bf16.msra.mxu0 %v739
      %844 = vmatprep.subr.bf16.mxu0 0
      %845 = vmatpush1.bf16.msra.mxu0 %v740
      %846 = vmatprep.mubr.bf16.mxu0 %v509
      %847 = vmatmul.mubr.bf16.gmra.mrb[0].mxu0 %v508
      %v848 = vpop.f32.mrb[0].mxu0
      %v849 = vadd.f32 %v808, %v848
      %v850 = vpop.f32.mrb[0].mxu0
      %v851 = vpop.f32.mrb[0].mxu0
      %v852 = vadd.f32 %v811, %v851
      %v853 = vpop.f32.mrb[0].mxu0
      %854 = vdwg.mxu0
      %v855 = vld [vmem:[#allocation6] sm:$0xff]
      %v856 = vld [vmem:[#allocation6 + $0x8] sm:$0x3]
      %v857 = vadd.f32 %v849, %v855
      %v858 = vadd.f32 %v852, %v856
      %859 = vadd.xlane.f32.xlu0 %v857
      %v860 = vpop.xlane.xlu0 %859
      %vm861 = vcmask 1041408
      %v862 = vsel %vm861, %v858, 0.0
      %863 = vadd.xlane.f32.xlu0 %v862
      %v864 = vpop.xlane.xlu0 %863
      %v865 = vrcp.pop 128.0
      %v866 = vmul.f32 %v860, %v865
      %v867 = vmul.f32 %v864, %v865
      %v868 = vsub.f32 %v857, %v866
      %v869 = vsub.f32 %v858, %v867
      %v870 = vmul.f32 %v868, %v868
      %v871 = vmul.f32 %v869, %v869
      %872 = vadd.xlane.f32.xlu0 %v870
      %v873 = vpop.xlane.xlu0 %872
      %v874 = vsel %vm861, %v871, 0.0
      %875 = vadd.xlane.f32.xlu0 %v874
      %v876 = vpop.xlane.xlu0 %875
      %v877 = vmul.f32 %v873, %v865
      %v878 = vmul.f32 %v876, %v865
      %v879 = vadd.f32 %v877, 1e-05
      %v880 = vadd.f32 %v878, 1e-05
      %v881 = vrsqrt.pop %v879
      %v882 = vrsqrt.pop %v880
      %v883 = vmul.f32 %v868, %v881
      %v884 = vmul.f32 %v869, %v882
      %v885 = vld [vmem:[#allocation14] sm:$0x1]
      %v887 = vlaneseq
      %v888 = vshrl.u32 %v887, 7
      %v889 = vsub.s32 0, %v888
      %v890 = vrot.slane %v885, %v889
      %v892 = vmul.f32 %v883, %v890
      %v893 = vmul.f32 %v884, %v890
      %v894 = vld [vmem:[#allocation15] sm:$0x1]
      %v896 = vlaneseq
      %v897 = vshrl.u32 %v896, 7
      %v898 = vsub.s32 0, %v897
      %v899 = vrot.slane %v894, %v898
      %v901 = vadd.f32 %v892, %v899
      %v902 = vadd.f32 %v893, %v899
      %903 = vst [vmem:[#allocation17] sm:$0xff] %v901
      %904 = vst [vmem:[#allocation17 + $0x8] sm:$0x3] %v902
      %v905 = vpack.c.bf16 %v902, %v901
      %v907 = vunpack.c.l.b16 %v905
      %v908 = vunpack.c.h.b16 %v905
      %v909 = vpack.c.b16 %v907, %v907
      %v910 = vpack.c.b16 %v908, %v908
      %913 = vst [vmem:[#allocation18] sm:$0xf] %v909
      %914 = vst [vmem:[#allocation18 + $0x4] sm:$0x1] %v910
    $region73: #{ast_forward.7} parent=1 // pred_fallthru
      _
    // Predicated region
    $region74: #{ast_forward.7} parent=1 // pred_check
      _
    $region75: #{ast_forward.7} parent=1 // pred_check_branch
      %916 = sbr.rel (0) target = $region77
    $region76: #{ast_forward.7} parent=1 // pred_region
      %s918 = ssub.s32 256, 256
      %919 = vsyncadd [#allocation5], %s918
      %s920 = sshll.u32 [#allocation17], 4
      %s921 = int_to_ptr.vmem [resolvable:$true] %s920
      %926 = dma.vmem_to_hbm [thread:$0]  %s921, 256, %s8, [#allocation5], 128, 128, 8
    $region77: #{ast_forward.7} parent=1 // pred_fallthru
      _
    // Predicated region
    $region78: #{ast_forward.7} parent=1 // pred_check
      _
    $region79: #{ast_forward.7} parent=1 // pred_check_branch
      %928 = sbr.rel (0) target = $region81
    $region80: #{ast_forward.7} parent=1 // pred_region
      %s930 = ssub.s32 128, 128
      %931 = vsyncadd [#allocation19], %s930
      %s932 = sshll.u32 [#allocation18], 4
      %s933 = int_to_ptr.vmem [resolvable:$true] %s932
      %938 = dma.vmem_to_hbm [thread:$0]  %s933, 128, %s9, [#allocation19], 64, 64, 4
    $region81: #{ast_forward.7} parent=1 // pred_fallthru
      _
    // Predicated region
    $region82: #{ast_forward.7} parent=1 // pred_check
      _
    $region83: #{ast_forward.7} parent=1 // pred_check_branch
      %940 = sbr.rel (0) target = $region85
    $region84: #{ast_forward.7} parent=1 // pred_region
      %941 = dma.done [#allocation5], 256
    $region85: #{ast_forward.7} parent=1 // pred_fallthru
      _
    // Predicated region
    $region86: #{ast_forward.7} parent=1 // pred_check
      _
    $region87: #{ast_forward.7} parent=1 // pred_check_branch
      %943 = sbr.rel (0) target = $region89
    $region88: #{ast_forward.7} parent=1 // pred_region
      %944 = dma.done [#allocation19], 128
    $region89: #{ast_forward.7} parent=1 // pred_fallthru
      _
    %945 = vsyncpa [#allocation4], 1
    %946 = vsyncpa [#allocation7], 1
    %947 = vsyncpa [#allocation10], 1
    %948 = vsyncpa [#allocation13], 1
    %949 = vsyncpa [#allocation16], 1
    %950 = vsyncpa [#allocation5], 1
    %951 = vsyncpa [#allocation19], 1

</llo_original>
